<compile_context>
chip_gen: v5e
topology: v5e:2x2
jax: 0.10.0
libtpu: 0.0.40
codegen_flags: <defaults>
</compile_context>

<pallas_src>
import numpy as np

import jax
import jax.numpy as jnp
from jax.experimental import pallas as pl
from jax.experimental.pallas import tpu as pltpu


N_OUT = 32        # encoder output features (module spec)
N_OUT_PAD = 128   # lane-dense padded output width


# ---------------------------------------------------------------------------
# Init-time constant construction (numpy, done once).
# ---------------------------------------------------------------------------
def _make_shift_mats(hi, wi, ksize=3, stride=2, pad=1):
    """0/1 select matrices S[k, pi, po] for a 3x3 stride-2 pad-1 conv."""
    ho = (hi + 2 * pad - ksize) // stride + 1
    wo = (wi + 2 * pad - ksize) // stride + 1
    s = np.zeros((ksize * ksize, hi * wi, ho * wo), np.float32)
    for kh in range(ksize):
        for kw in range(ksize):
            k = kh * ksize + kw
            for oh in range(ho):
                for ow in range(wo):
                    ih = oh * stride + kh - pad
                    iw = ow * stride + kw - pad
                    if 0 <= ih < hi and 0 <= iw < wi:
                        s[k, ih * wi + iw, oh * wo + ow] = 1.0
    return s, ho, wo


def _merge_conv_matrix(w, s):
    """Merge PyTorch conv weight (c_out,c_in,3,3) with shift mats (9,Pin,Pout)
    into one (c_in*Pin, c_out*Pout) matmul matrix (zero-padding rows stay 0)."""
    c_out, c_in = w.shape[0], w.shape[1]
    wk = w.transpose(2, 3, 0, 1).reshape(9, c_out, c_in)          # (k, co, ci)
    m4 = np.einsum('kpq,koc->cpoq', s, wk)                        # (ci,Pin,co,Pout)
    return np.ascontiguousarray(m4.reshape(c_in * s.shape[1], c_out * s.shape[2]))


# ---------------------------------------------------------------------------
# Fused Pallas kernel: (1-x) -> conv1+ReLU -> conv2+ReLU -> flatten -> Linear
# Three lane-dense MXU matmuls, f32 elementwise, bf16 MXU operands.
# ---------------------------------------------------------------------------
def _sensor_fused_kernel(x_ref, m1_ref, b1_ref, m2_ref, b2_ref,
                         w3_ref, b3_ref, o_ref):
    f32 = jnp.float32
    bf16 = jnp.bfloat16

    # (1)  1 - input_tensor (f32 VPU), on the flat NCHW (B, c_in*H*W) slab.
    x = 1.0 - x_ref[...]                                            # (B, 512) f32

    # (2)  conv1 + bias + ReLU as ONE K=512 matmul.
    a1 = jnp.dot(x.astype(bf16), m1_ref[...],
                 preferred_element_type=f32)                        # (B, 512)
    h1 = jnp.maximum(a1 + b1_ref[...], 0.0)

    # (3)  conv2 + bias + ReLU as ONE K=512 matmul.
    a2 = jnp.dot(h1.astype(bf16), m2_ref[...],
                 preferred_element_type=f32)                        # (B, 256)
    h2 = jnp.maximum(a2 + b2_ref[...], 0.0)

    # (4)  flatten (already NCHW-flat) + Linear as ONE K=256 matmul,
    #      padded to 128 output lanes.
    out = jnp.dot(h2.astype(bf16), w3_ref[...],
                  preferred_element_type=f32) + b3_ref[...]         # (B, 128)
    o_ref[...] = out.astype(o_ref.dtype)


def _fused_encoder_call(x2d, params):
    """x2d: (B, c_in*H*W) float32 flat activations -> (B, N_OUT_PAD) float32."""
    b = x2d.shape[0]
    vmem = pl.BlockSpec(memory_space=pltpu.MemorySpace.VMEM)
    return pl.pallas_call(
        _sensor_fused_kernel,
        out_shape=jax.ShapeDtypeStruct((b, N_OUT_PAD), jnp.float32),
        in_specs=[vmem] * 7,
        out_specs=vmem,
    )(x2d, params["m1"], params["b1"], params["m2"], params["b2"],
      params["w3"], params["b3"])


# ---------------------------------------------------------------------------
# Parameter init: PyTorch-layout weights -> one-time merged kernel layout.
# ---------------------------------------------------------------------------
def init_sensor_params(key, h, w, c_in=2, c1=8, c2=16, n_out=N_OUT):
    k1, k2, k3, k4, k5, k6 = jax.random.split(key, 6)

    s1, h1o, w1o = _make_shift_mats(h, w)
    s2, h2o, w2o = _make_shift_mats(h1o, w1o)
    p1, p2 = h1o * w1o, h2o * w2o

    # PyTorch-layout weights (deterministic synthetic stand-ins for Encoder).
    w1 = jax.random.normal(k1, (c1, c_in, 3, 3), jnp.float32) * 0.1
    b1 = jax.random.normal(k2, (c1,), jnp.float32) * 0.01
    w2 = jax.random.normal(k3, (c2, c1, 3, 3), jnp.float32) * 0.1
    b2 = jax.random.normal(k4, (c2,), jnp.float32) * 0.01
    w3 = jax.random.normal(k5, (n_out, c2 * p2), jnp.float32) * 0.1
    b3 = jax.random.normal(k6, (n_out,), jnp.float32) * 0.01

    # One-time re-layouts (init time, not per forward):
    m1 = _merge_conv_matrix(np.asarray(w1), s1)            # (c_in*h*w, c1*p1)
    m2 = _merge_conv_matrix(np.asarray(w2), s2)            # (c1*p1,    c2*p2)
    w3k = np.zeros((c2 * p2, N_OUT_PAD), np.float32)
    w3k[:, :n_out] = np.asarray(w3).T                       # (c2*p2, 128)
    b3k = np.zeros((1, N_OUT_PAD), np.float32)
    b3k[0, :n_out] = np.asarray(b3)
    b1f = np.repeat(np.asarray(b1), p1)[None, :]            # (1, c1*p1)
    b2f = np.repeat(np.asarray(b2), p2)[None, :]            # (1, c2*p2)

    params = {
        "m1": jnp.asarray(m1, jnp.bfloat16),
        "b1": jnp.asarray(b1f, jnp.float32),
        "m2": jnp.asarray(m2, jnp.bfloat16),
        "b2": jnp.asarray(b2f, jnp.float32),
        "w3": jnp.asarray(w3k, jnp.bfloat16),
        "b3": jnp.asarray(b3k, jnp.float32),
    }
    raw = {"w1": w1, "b1": b1, "w2": w2, "b2": b2, "w3": w3, "b3": b3}
    return params, raw


# ---------------------------------------------------------------------------
# Sensor forward (mirrors Sensor_not_quantized.forward)
# ---------------------------------------------------------------------------
@jax.jit
def sensor_forward(params, prev_screen, curr_screen):
    """prev_screen / curr_screen: (1, H, W) grayscale float32 in [0, 1].

    Returns (encoded, curr_screen), like the PyTorch module.
    """
    h, w = curr_screen.shape[-2:]
    # torch.cat((prev, curr)).reshape(1, 2, h, w), kept as a flat NCHW row;
    # `1 - input_tensor` happens inside the fused kernel.
    x2d = jnp.concatenate([prev_screen, curr_screen], axis=0).reshape(1, 2 * h * w)
    enc_pad = _fused_encoder_call(x2d, params)
    return enc_pad[:, :N_OUT], curr_screen


# ---------------------------------------------------------------------------
# References for correctness checks.
# ---------------------------------------------------------------------------
def reference_forward_quantized(params, x2d):
    """Pure-JAX replica of the kernel math with the SAME bf16-rounded weights
    and activations (f32 accumulate) -> tight comparison."""
    f32 = jnp.float32
    hi = jax.lax.Precision.HIGHEST
    q = lambda a: a.astype(jnp.bfloat16).astype(f32)
    x = 1.0 - x2d
    a1 = jnp.dot(q(x), params["m1"].astype(f32), precision=hi)
    h1 = jnp.maximum(a1 + params["b1"], 0.0)
    a2 = jnp.dot(q(h1), params["m2"].astype(f32), precision=hi)
    h2 = jnp.maximum(a2 + params["b2"], 0.0)
    out = jnp.dot(q(h2), params["w3"].astype(f32), precision=hi) + params["b3"]
    return out[:, :N_OUT]


def reference_forward(raw, prev_screen, curr_screen):
    """Full-f32 PyTorch-semantics reference (conv2d/conv2d/linear)."""
    h, w = curr_screen.shape[-2:]
    x = jnp.concatenate([prev_screen, curr_screen], axis=0).reshape(1, 2, h, w)
    x = 1.0 - x
    y = jax.lax.conv_general_dilated(
        x, raw["w1"], window_strides=(2, 2), padding=((1, 1), (1, 1)),
        dimension_numbers=("NCHW", "OIHW", "NCHW"),
        precision=jax.lax.Precision.HIGHEST)
    y = jnp.maximum(y + raw["b1"].reshape(1, -1, 1, 1), 0.0)
    y = jax.lax.conv_general_dilated(
        y, raw["w2"], window_strides=(2, 2), padding=((1, 1), (1, 1)),
        dimension_numbers=("NCHW", "OIHW", "NCHW"),
        precision=jax.lax.Precision.HIGHEST)
    y = jnp.maximum(y + raw["b2"].reshape(1, -1, 1, 1), 0.0)
    flat = y.reshape(1, -1)
    return jnp.dot(flat, raw["w3"].T,
                   precision=jax.lax.Precision.HIGHEST) + raw["b3"].reshape(1, -1)


# ---------------------------------------------------------------------------
# Main
# ---------------------------------------------------------------------------
if __name__ == "__main__":
    H = W = 16
    key = jax.random.PRNGKey(0)
    k_params, k_prev, k_curr, k_batch = jax.random.split(key, 4)

    params, raw = init_sensor_params(k_params, H, W)

    # Synthetic stand-ins for get_screen(env): grayscale (1, H, W) in [0, 1].
    prev_screen = jax.random.uniform(k_prev, (1, H, W), jnp.float32)
    curr_screen = jax.random.uniform(k_curr, (1, H, W), jnp.float32)

    encoded, curr_out = sensor_forward(params, prev_screen, curr_screen)
    jax.block_until_ready(encoded)
    jax.block_until_ready(curr_out)

    assert encoded.shape == (1, N_OUT)
    assert curr_out.shape == (1, H, W)

    # (a) Tight check vs a reference using the identical bf16-rounded
    #     weights/activations -> catches any layout/indexing regression.
    x2d = jnp.concatenate([prev_screen, curr_screen], axis=0).reshape(1, 2 * H * W)
    ref_q = reference_forward_quantized(params, x2d)
    np.testing.assert_allclose(np.asarray(encoded), np.asarray(ref_q),
                               rtol=2e-3, atol=2e-4)

    # (b) Quantization-level check vs the full-f32 PyTorch-semantics reference
    #     (tolerance set by bf16 weight/activation rounding, ~1e-3 abs here).
    ref_f32 = reference_forward(raw, prev_screen, curr_screen)
    np.testing.assert_allclose(np.asarray(encoded), np.asarray(ref_f32),
                               rtol=3e-2, atol=3e-3)

    # (c) Batched encoder call: B screen pairs processed by ONE pallas_call,
    #     constant weights DMA'd once (perf-review amortization path).
    B = 4
    xb = jax.random.uniform(k_batch, (B, 2 * H * W), jnp.float32)
    enc_b = _fused_encoder_call(xb, params)[:, :N_OUT]
    jax.block_until_ready(enc_b)
    ref_b = reference_forward_quantized(params, xb)
    np.testing.assert_allclose(np.asarray(enc_b), np.asarray(ref_b),
                               rtol=2e-3, atol=2e-4)

    print("KERNEL_OK")
</pallas_src>

<mosaic_0001>
module attributes {stable_mosaic.version = 11 : i64} {
  func.func @_sensor_fused_kernel(%arg0: memref<1x512xf32, #tpu.memory_space<vmem>>, %arg1: memref<512x512xbf16, #tpu.memory_space<vmem>>, %arg2: memref<1x512xf32, #tpu.memory_space<vmem>>, %arg3: memref<512x256xbf16, #tpu.memory_space<vmem>>, %arg4: memref<1x256xf32, #tpu.memory_space<vmem>>, %arg5: memref<256x128xbf16, #tpu.memory_space<vmem>>, %arg6: memref<1x128xf32, #tpu.memory_space<vmem>>, %arg7: memref<1x128xf32, #tpu.memory_space<vmem>>) attributes {dimension_semantics = [], scalar_prefetch = 0 : i64, scratch_operands = 0 : i64, tpu.core_type = #tpu.core_type<tc>} {
    %c0 = arith.constant 0 : index
    %c0_0 = arith.constant 0 : index
    %0 = vector.load %arg0[%c0, %c0_0] : memref<1x512xf32, #tpu.memory_space<vmem>>, vector<1x512xf32>
    %cst = arith.constant 1.000000e+00 : f32
    %1 = vector.broadcast %cst : f32 to vector<1x512xf32>
    %2 = arith.subf %1, %0 : vector<1x512xf32>
    %3 = arith.truncf %2 : vector<1x512xf32> to vector<1x512xbf16>
    %c0_1 = arith.constant 0 : index
    %c0_2 = arith.constant 0 : index
    %4 = vector.load %arg1[%c0_1, %c0_2] : memref<512x512xbf16, #tpu.memory_space<vmem>>, vector<512x512xbf16>
    %cst_3 = arith.constant dense<0.000000e+00> : vector<1x512xf32>
    %5 = tpu.matmul %3, %4, %cst_3 {dimension_numbers = #tpu.dot_dimension_numbers<[1], [0], [0], [1], [0, 0, 1, 1], [], []>} : vector<1x512xbf16>, vector<512x512xbf16>, vector<1x512xf32> -> vector<1x512xf32>
    %c0_4 = arith.constant 0 : index
    %c0_5 = arith.constant 0 : index
    %6 = vector.load %arg2[%c0_4, %c0_5] : memref<1x512xf32, #tpu.memory_space<vmem>>, vector<1x512xf32>
    %7 = arith.addf %5, %6 : vector<1x512xf32>
    %cst_6 = arith.constant 0.000000e+00 : f32
    %8 = vector.broadcast %cst_6 : f32 to vector<1x512xf32>
    %9 = arith.maximumf %7, %8 : vector<1x512xf32>
    %10 = arith.truncf %9 : vector<1x512xf32> to vector<1x512xbf16>
    %c0_7 = arith.constant 0 : index
    %c0_8 = arith.constant 0 : index
    %11 = vector.load %arg3[%c0_7, %c0_8] : memref<512x256xbf16, #tpu.memory_space<vmem>>, vector<512x256xbf16>
    %cst_9 = arith.constant dense<0.000000e+00> : vector<1x256xf32>
    %12 = tpu.matmul %10, %11, %cst_9 {dimension_numbers = #tpu.dot_dimension_numbers<[1], [0], [0], [1], [0, 0, 1, 1], [], []>} : vector<1x512xbf16>, vector<512x256xbf16>, vector<1x256xf32> -> vector<1x256xf32>
    %c0_10 = arith.constant 0 : index
    %c0_11 = arith.constant 0 : index
    %13 = vector.load %arg4[%c0_10, %c0_11] : memref<1x256xf32, #tpu.memory_space<vmem>>, vector<1x256xf32>
    %14 = arith.addf %12, %13 : vector<1x256xf32>
    %cst_12 = arith.constant 0.000000e+00 : f32
    %15 = vector.broadcast %cst_12 : f32 to vector<1x256xf32>
    %16 = arith.maximumf %14, %15 : vector<1x256xf32>
    %17 = arith.truncf %16 : vector<1x256xf32> to vector<1x256xbf16>
    %c0_13 = arith.constant 0 : index
    %c0_14 = arith.constant 0 : index
    %18 = vector.load %arg5[%c0_13, %c0_14] : memref<256x128xbf16, #tpu.memory_space<vmem>>, vector<256x128xbf16>
    %cst_15 = arith.constant dense<0.000000e+00> : vector<1x128xf32>
    %19 = tpu.matmul %17, %18, %cst_15 {dimension_numbers = #tpu.dot_dimension_numbers<[1], [0], [0], [1], [0, 0, 1, 1], [], []>} : vector<1x256xbf16>, vector<256x128xbf16>, vector<1x128xf32> -> vector<1x128xf32>
    %c0_16 = arith.constant 0 : index
    %c0_17 = arith.constant 0 : index
    %20 = vector.load %arg6[%c0_16, %c0_17] : memref<1x128xf32, #tpu.memory_space<vmem>>, vector<1x128xf32>
    %21 = arith.addf %19, %20 : vector<1x128xf32>
    %c0_18 = arith.constant 0 : index
    %c0_19 = arith.constant 0 : index
    %22 = vector.load %arg7[%c0_18, %c0_19] : memref<1x128xf32, #tpu.memory_space<vmem>>, vector<1x128xf32>
    tpu.vector_store %arg7[%c0_18, %c0_19], %21 {strides = array<i32>} : memref<1x128xf32, #tpu.memory_space<vmem>>, vector<1x128xf32>,
    return
  }
}

</mosaic_0001>

<llo_original>
// kernel: sensor_forward.1
$region0: #{sensor_forward.1}
  #allocation0 [shape = 'u32[]', space=smem, size = 0x4, offset = 0x4, fixed_abs, tag = 'smem constant byte address 0x4 - core index']
  #allocation1 [shape = 'u32[72,128]{1,0:T(1,128)}', space=vmem, size = 0x9000, scoped, tag = 'internal scratch']
  %s0 = inlined_call_operand.vmem [shape: f32[1,512], index: 0, kind: input, shape index: {}]
  %s1 = inlined_call_operand.hbm [shape: bf16[512,512], index: 1, kind: input, shape index: {}]
  %s2 = inlined_call_operand.vmem [shape: f32[1,512], index: 2, kind: input, shape index: {}]
  %s3 = inlined_call_operand.hbm [shape: bf16[512,256], index: 3, kind: input, shape index: {}]
  %s4 = inlined_call_operand.vmem [shape: f32[1,256], index: 4, kind: input, shape index: {}]
  %s5 = inlined_call_operand.hbm [shape: bf16[256,128], index: 5, kind: input, shape index: {}]
  %s6 = inlined_call_operand.vmem [shape: f32[1,128], index: 6, kind: input, shape index: {}]
  %s7 = inlined_call_operand.hbm [shape: f32[1,128], index: 7, kind: output, shape index: {}]
  %s8 = sld [smem:[#allocation0]]
  $region50: #{sensor_forward.1} parent=0
    _
  %s10 = ssub.s32 1, %s8
  %s11 = scalar_select 0, %s10, %s8
  $region1: #{sensor_forward.1} parent=0
    #allocation2 [shape = 'u8[524288]{0}', space=vmem, size = 0x80000, scoped, tag = 'input window, operand 1, single buffered']
    #allocation3 [shape = 's32[1]{0}', space=sflag, size = 0x4, scoped, tag = 'scoped memory for sensor_forward.1']
    #allocation4 [shape = 's32[1]{0}', space=sflag, size = 0x4, scoped, tag = 'scoped memory for sensor_forward.1']
    #allocation5 [shape = 'u8[262144]{0}', space=vmem, size = 0x40000, scoped, tag = 'input window, operand 3, single buffered']
    #allocation6 [shape = 's32[1]{0}', space=sflag, size = 0x4, scoped, tag = 'scoped memory for sensor_forward.1']
    #allocation7 [shape = 'u8[65536]{0}', space=vmem, size = 0x10000, scoped, tag = 'input window, operand 5, single buffered']
    #allocation8 [shape = 'u8[512]{0}', space=vmem, size = 0x400, scoped, tag = 'output window, operand 0, single buffered']
    %12 = vsyncpa [#allocation3], 0
    %13 = vsyncpa [#allocation6], 0
    %14 = vsyncpa [#allocation4], 0
    // Predicated region
    $region2: #{sensor_forward.1} parent=1 // pred_check
      _
    $region3: #{sensor_forward.1} parent=1 // pred_check_branch
      %16 = sbr.rel (0) target = $region5
    $region4: #{sensor_forward.1} parent=1 // pred_region
      _
    $region5: #{sensor_forward.1} parent=1 // pred_fallthru
      _
    // Predicated region
    $region6: #{sensor_forward.1} parent=1 // pred_check
      _
    $region7: #{sensor_forward.1} parent=1 // pred_check_branch
      %18 = sbr.rel (0) target = $region9
    $region8: #{sensor_forward.1} parent=1 // pred_region
      %20 = vsyncadd [#allocation3], 0
      %s21 = sshll.u32 %s1, 4
      %s22 = int_to_ptr.hbm [resolvable:$true] %s21
      %s23 = sshll.u32 [#allocation2], 4
      %s24 = int_to_ptr.vmem [resolvable:$true] %s23
      %29 = dma.hbm_to_vmem [thread:$0]  %s22, 16384, %s24, [#allocation3], 256, 256, 16
    $region9: #{sensor_forward.1} parent=1 // pred_fallthru
      _
    // Predicated region
    $region10: #{sensor_forward.1} parent=1 // pred_check
      _
    $region11: #{sensor_forward.1} parent=1 // pred_check_branch
      %31 = sbr.rel (0) target = $region13
    $region12: #{sensor_forward.1} parent=1 // pred_region
      _
    $region13: #{sensor_forward.1} parent=1 // pred_fallthru
      _
    // Predicated region
    $region14: #{sensor_forward.1} parent=1 // pred_check
      _
    $region15: #{sensor_forward.1} parent=1 // pred_check_branch
      %33 = sbr.rel (0) target = $region17
    $region16: #{sensor_forward.1} parent=1 // pred_region
      %35 = vsyncadd [#allocation6], 0
      %s36 = sshll.u32 %s3, 4
      %s37 = int_to_ptr.hbm [resolvable:$true] %s36
      %s38 = sshll.u32 [#allocation5], 4
      %s39 = int_to_ptr.vmem [resolvable:$true] %s38
      %44 = dma.hbm_to_vmem [thread:$0]  %s37, 8192, %s39, [#allocation6], 128, 128, 8
    $region17: #{sensor_forward.1} parent=1 // pred_fallthru
      _
    // Predicated region
    $region18: #{sensor_forward.1} parent=1 // pred_check
      _
    $region19: #{sensor_forward.1} parent=1 // pred_check_branch
      %46 = sbr.rel (0) target = $region21
    $region20: #{sensor_forward.1} parent=1 // pred_region
      _
    $region21: #{sensor_forward.1} parent=1 // pred_fallthru
      _
    // Predicated region
    $region22: #{sensor_forward.1} parent=1 // pred_check
      _
    $region23: #{sensor_forward.1} parent=1 // pred_check_branch
      %48 = sbr.rel (0) target = $region25
    $region24: #{sensor_forward.1} parent=1 // pred_region
      %50 = vsyncadd [#allocation6], 0
      %s51 = sshll.u32 %s5, 4
      %s52 = int_to_ptr.hbm [resolvable:$true] %s51
      %s53 = sshll.u32 [#allocation7], 4
      %s54 = int_to_ptr.vmem [resolvable:$true] %s53
      %59 = dma.hbm_to_vmem [thread:$0]  %s52, 2048, %s54, [#allocation6], 64, 64, 4
    $region25: #{sensor_forward.1} parent=1 // pred_fallthru
      _
    // Predicated region
    $region26: #{sensor_forward.1} parent=1 // pred_check
      _
    $region27: #{sensor_forward.1} parent=1 // pred_check_branch
      %61 = sbr.rel (0) target = $region29
    $region28: #{sensor_forward.1} parent=1 // pred_region
      _
    $region29: #{sensor_forward.1} parent=1 // pred_fallthru
      _
    // Predicated region
    $region30: #{sensor_forward.1} parent=1 // pred_check
      _
    $region31: #{sensor_forward.1} parent=1 // pred_check_branch
      %63 = sbr.rel (0) target = $region33
    $region32: #{sensor_forward.1} parent=1 // pred_region
      %65 = dma.done [#allocation3], 16384
    $region33: #{sensor_forward.1} parent=1 // pred_fallthru
      _
    // Predicated region
    $region34: #{sensor_forward.1} parent=1 // pred_check
      _
    $region35: #{sensor_forward.1} parent=1 // pred_check_branch
      %67 = sbr.rel (0) target = $region37
    $region36: #{sensor_forward.1} parent=1 // pred_region
      %69 = dma.done [#allocation6], 8192
    $region37: #{sensor_forward.1} parent=1 // pred_fallthru
      _
    // Predicated region
    $region38: #{sensor_forward.1} parent=1 // pred_check
      _
    $region39: #{sensor_forward.1} parent=1 // pred_check_branch
      %71 = sbr.rel (0) target = $region41
    $region40: #{sensor_forward.1} parent=1 // pred_region
      %73 = dma.done [#allocation6], 2048
    $region41: #{sensor_forward.1} parent=1 // pred_fallthru
      _
    %v74 = vld [vmem:[%s0] sm:$0xf]
    %v75 = vsub.f32 1.0, %v74
    %v77 = vperm.slane %v75, 0
    %v78 = vperm.slane %v75, 1
    %v79 = vperm.slane %v75, 2
    %v80 = vperm.slane %v75, 3
    %v85 = vpack.c.bf16 %v77, %v77
    %v86 = vpack.c.bf16 %v78, %v78
    %v87 = vpack.c.bf16 %v79, %v79
    %v88 = vpack.c.bf16 %v80, %v80
    %v89 = vld [vmem:[#allocation2] sm:$0xff]
    %v90 = vld [vmem:[#allocation2 + $0x8] sm:$0xff]
    %v91 = vld [vmem:[#allocation2 + $0x10] sm:$0xff]
    %v92 = vld [vmem:[#allocation2 + $0x18] sm:$0xff]
    %v93 = vld [vmem:[#allocation2 + $0x20] sm:$0xff]
    %v94 = vld [vmem:[#allocation2 + $0x28] sm:$0xff]
    %v95 = vld [vmem:[#allocation2 + $0x30] sm:$0xff]
    %v96 = vld [vmem:[#allocation2 + $0x38] sm:$0xff]
    %v97 = vld [vmem:[#allocation2 + $0x40] sm:$0xff]
    %v98 = vld [vmem:[#allocation2 + $0x48] sm:$0xff]
    %v99 = vld [vmem:[#allocation2 + $0x50] sm:$0xff]
    %v100 = vld [vmem:[#allocation2 + $0x58] sm:$0xff]
    %v101 = vld [vmem:[#allocation2 + $0x60] sm:$0xff]
    %v102 = vld [vmem:[#allocation2 + $0x68] sm:$0xff]
    %v103 = vld [vmem:[#allocation2 + $0x70] sm:$0xff]
    %v104 = vld [vmem:[#allocation2 + $0x78] sm:$0xff]
    %v105 = vld [vmem:[#allocation2 + $0x80] sm:$0xff]
    %v106 = vld [vmem:[#allocation2 + $0x88] sm:$0xff]
    %v107 = vld [vmem:[#allocation2 + $0x90] sm:$0xff]
    %v108 = vld [vmem:[#allocation2 + $0x98] sm:$0xff]
    %v109 = vld [vmem:[#allocation2 + $0xa0] sm:$0xff]
    %v110 = vld [vmem:[#allocation2 + $0xa8] sm:$0xff]
    %v111 = vld [vmem:[#allocation2 + $0xb0] sm:$0xff]
    %v112 = vld [vmem:[#allocation2 + $0xb8] sm:$0xff]
    %v113 = vld [vmem:[#allocation2 + $0xc0] sm:$0xff]
    %v114 = vld [vmem:[#allocation2 + $0xc8] sm:$0xff]
    %v115 = vld [vmem:[#allocation2 + $0xd0] sm:$0xff]
    %v116 = vld [vmem:[#allocation2 + $0xd8] sm:$0xff]
    %v117 = vld [vmem:[#allocation2 + $0xe0] sm:$0xff]
    %v118 = vld [vmem:[#allocation2 + $0xe8] sm:$0xff]
    %v119 = vld [vmem:[#allocation2 + $0xf0] sm:$0xff]
    %v120 = vld [vmem:[#allocation2 + $0xf8] sm:$0xff]
    %v121 = vld [vmem:[#allocation2 + $0x100] sm:$0xff]
    %v122 = vld [vmem:[#allocation2 + $0x108] sm:$0xff]
    %v123 = vld [vmem:[#allocation2 + $0x110] sm:$0xff]
    %v124 = vld [vmem:[#allocation2 + $0x118] sm:$0xff]
    %v125 = vld [vmem:[#allocation2 + $0x120] sm:$0xff]
    %v126 = vld [vmem:[#allocation2 + $0x128] sm:$0xff]
    %v127 = vld [vmem:[#allocation2 + $0x130] sm:$0xff]
    %v128 = vld [vmem:[#allocation2 + $0x138] sm:$0xff]
    %v129 = vld [vmem:[#allocation2 + $0x140] sm:$0xff]
    %v130 = vld [vmem:[#allocation2 + $0x148] sm:$0xff]
    %v131 = vld [vmem:[#allocation2 + $0x150] sm:$0xff]
    %v132 = vld [vmem:[#allocation2 + $0x158] sm:$0xff]
    %v133 = vld [vmem:[#allocation2 + $0x160] sm:$0xff]
    %v134 = vld [vmem:[#allocation2 + $0x168] sm:$0xff]
    %v135 = vld [vmem:[#allocation2 + $0x170] sm:$0xff]
    %v136 = vld [vmem:[#allocation2 + $0x178] sm:$0xff]
    %v137 = vld [vmem:[#allocation2 + $0x180] sm:$0xff]
    %v138 = vld [vmem:[#allocation2 + $0x188] sm:$0xff]
    %v139 = vld [vmem:[#allocation2 + $0x190] sm:$0xff]
    %v140 = vld [vmem:[#allocation2 + $0x198] sm:$0xff]
    %v141 = vld [vmem:[#allocation2 + $0x1a0] sm:$0xff]
    %v142 = vld [vmem:[#allocation2 + $0x1a8] sm:$0xff]
    %v143 = vld [vmem:[#allocation2 + $0x1b0] sm:$0xff]
    %v144 = vld [vmem:[#allocation2 + $0x1b8] sm:$0xff]
    %v145 = vld [vmem:[#allocation2 + $0x1c0] sm:$0xff]
    %v146 = vld [vmem:[#allocation2 + $0x1c8] sm:$0xff]
    %v147 = vld [vmem:[#allocation2 + $0x1d0] sm:$0xff]
    %v148 = vld [vmem:[#allocation2 + $0x1d8] sm:$0xff]
    %v149 = vld [vmem:[#allocation2 + $0x1e0] sm:$0xff]
    %v150 = vld [vmem:[#allocation2 + $0x1e8] sm:$0xff]
    %v151 = vld [vmem:[#allocation2 + $0x1f0] sm:$0xff]
    %v152 = vld [vmem:[#allocation2 + $0x1f8] sm:$0xff]
    %v153 = vld [vmem:[#allocation2 + $0x200] sm:$0xff]
    %v154 = vld [vmem:[#allocation2 + $0x208] sm:$0xff]
    %v155 = vld [vmem:[#allocation2 + $0x210] sm:$0xff]
    %v156 = vld [vmem:[#allocation2 + $0x218] sm:$0xff]
    %v157 = vld [vmem:[#allocation2 + $0x220] sm:$0xff]
    %v158 = vld [vmem:[#allocation2 + $0x228] sm:$0xff]
    %v159 = vld [vmem:[#allocation2 + $0x230] sm:$0xff]
    %v160 = vld [vmem:[#allocation2 + $0x238] sm:$0xff]
    %v161 = vld [vmem:[#allocation2 + $0x240] sm:$0xff]
    %v162 = vld [vmem:[#allocation2 + $0x248] sm:$0xff]
    %v163 = vld [vmem:[#allocation2 + $0x250] sm:$0xff]
    %v164 = vld [vmem:[#allocation2 + $0x258] sm:$0xff]
    %v165 = vld [vmem:[#allocation2 + $0x260] sm:$0xff]
    %v166 = vld [vmem:[#allocation2 + $0x268] sm:$0xff]
    %v167 = vld [vmem:[#allocation2 + $0x270] sm:$0xff]
    %v168 = vld [vmem:[#allocation2 + $0x278] sm:$0xff]
    %v169 = vld [vmem:[#allocation2 + $0x280] sm:$0xff]
    %v170 = vld [vmem:[#allocation2 + $0x288] sm:$0xff]
    %v171 = vld [vmem:[#allocation2 + $0x290] sm:$0xff]
    %v172 = vld [vmem:[#allocation2 + $0x298] sm:$0xff]
    %v173 = vld [vmem:[#allocation2 + $0x2a0] sm:$0xff]
    %v174 = vld [vmem:[#allocation2 + $0x2a8] sm:$0xff]
    %v175 = vld [vmem:[#allocation2 + $0x2b0] sm:$0xff]
    %v176 = vld [vmem:[#allocation2 + $0x2b8] sm:$0xff]
    %v177 = vld [vmem:[#allocation2 + $0x2c0] sm:$0xff]
    %v178 = vld [vmem:[#allocation2 + $0x2c8] sm:$0xff]
    %v179 = vld [vmem:[#allocation2 + $0x2d0] sm:$0xff]
    %v180 = vld [vmem:[#allocation2 + $0x2d8] sm:$0xff]
    %v181 = vld [vmem:[#allocation2 + $0x2e0] sm:$0xff]
    %v182 = vld [vmem:[#allocation2 + $0x2e8] sm:$0xff]
    %v183 = vld [vmem:[#allocation2 + $0x2f0] sm:$0xff]
    %v184 = vld [vmem:[#allocation2 + $0x2f8] sm:$0xff]
    %v185 = vld [vmem:[#allocation2 + $0x300] sm:$0xff]
    %v186 = vld [vmem:[#allocation2 + $0x308] sm:$0xff]
    %v187 = vld [vmem:[#allocation2 + $0x310] sm:$0xff]
    %v188 = vld [vmem:[#allocation2 + $0x318] sm:$0xff]
    %v189 = vld [vmem:[#allocation2 + $0x320] sm:$0xff]
    %v190 = vld [vmem:[#allocation2 + $0x328] sm:$0xff]
    %v191 = vld [vmem:[#allocation2 + $0x330] sm:$0xff]
    %v192 = vld [vmem:[#allocation2 + $0x338] sm:$0xff]
    %v193 = vld [vmem:[#allocation2 + $0x340] sm:$0xff]
    %v194 = vld [vmem:[#allocation2 + $0x348] sm:$0xff]
    %v195 = vld [vmem:[#allocation2 + $0x350] sm:$0xff]
    %v196 = vld [vmem:[#allocation2 + $0x358] sm:$0xff]
    %v197 = vld [vmem:[#allocation2 + $0x360] sm:$0xff]
    %v198 = vld [vmem:[#allocation2 + $0x368] sm:$0xff]
    %v199 = vld [vmem:[#allocation2 + $0x370] sm:$0xff]
    %v200 = vld [vmem:[#allocation2 + $0x378] sm:$0xff]
    %v201 = vld [vmem:[#allocation2 + $0x380] sm:$0xff]
    %v202 = vld [vmem:[#allocation2 + $0x388] sm:$0xff]
    %v203 = vld [vmem:[#allocation2 + $0x390] sm:$0xff]
    %v204 = vld [vmem:[#allocation2 + $0x398] sm:$0xff]
    %v205 = vld [vmem:[#allocation2 + $0x3a0] sm:$0xff]
    %v206 = vld [vmem:[#allocation2 + $0x3a8] sm:$0xff]
    %v207 = vld [vmem:[#allocation2 + $0x3b0] sm:$0xff]
    %v208 = vld [vmem:[#allocation2 + $0x3b8] sm:$0xff]
    %v209 = vld [vmem:[#allocation2 + $0x3c0] sm:$0xff]
    %v210 = vld [vmem:[#allocation2 + $0x3c8] sm:$0xff]
    %v211 = vld [vmem:[#allocation2 + $0x3d0] sm:$0xff]
    %v212 = vld [vmem:[#allocation2 + $0x3d8] sm:$0xff]
    %v213 = vld [vmem:[#allocation2 + $0x3e0] sm:$0xff]
    %v214 = vld [vmem:[#allocation2 + $0x3e8] sm:$0xff]
    %v215 = vld [vmem:[#allocation2 + $0x3f0] sm:$0xff]
    %v216 = vld [vmem:[#allocation2 + $0x3f8] sm:$0xff]
    %v217 = vld [vmem:[%s2] sm:$0xf]
    %v346 = vunpack.c.l.b16 %v89
    %v347 = vunpack.c.h.b16 %v89
    %v348 = vunpack.c.l.b16 %v90
    %v349 = vunpack.c.h.b16 %v90
    %v350 = vunpack.c.l.b16 %v91
    %v351 = vunpack.c.h.b16 %v91
    %v352 = vunpack.c.l.b16 %v92
    %v353 = vunpack.c.h.b16 %v92
    %v354 = vunpack.c.l.b16 %v93
    %v355 = vunpack.c.h.b16 %v93
    %v356 = vunpack.c.l.b16 %v94
    %v357 = vunpack.c.h.b16 %v94
    %v358 = vunpack.c.l.b16 %v95
    %v359 = vunpack.c.h.b16 %v95
    %v360 = vunpack.c.l.b16 %v96
    %v361 = vunpack.c.h.b16 %v96
    %v362 = vunpack.c.l.b16 %v97
    %v363 = vunpack.c.h.b16 %v97
    %v364 = vunpack.c.l.b16 %v98
    %v365 = vunpack.c.h.b16 %v98
    %v366 = vunpack.c.l.b16 %v99
    %v367 = vunpack.c.h.b16 %v99
    %v368 = vunpack.c.l.b16 %v100
    %v369 = vunpack.c.h.b16 %v100
    %v370 = vunpack.c.l.b16 %v101
    %v371 = vunpack.c.h.b16 %v101
    %v372 = vunpack.c.l.b16 %v102
    %v373 = vunpack.c.h.b16 %v102
    %v374 = vunpack.c.l.b16 %v103
    %v375 = vunpack.c.h.b16 %v103
    %v376 = vunpack.c.l.b16 %v104
    %v377 = vunpack.c.h.b16 %v104
    %v378 = vunpack.c.l.b16 %v105
    %v379 = vunpack.c.h.b16 %v105
    %v380 = vunpack.c.l.b16 %v106
    %v381 = vunpack.c.h.b16 %v106
    %v382 = vunpack.c.l.b16 %v107
    %v383 = vunpack.c.h.b16 %v107
    %v384 = vunpack.c.l.b16 %v108
    %v385 = vunpack.c.h.b16 %v108
    %v386 = vunpack.c.l.b16 %v109
    %v387 = vunpack.c.h.b16 %v109
    %v388 = vunpack.c.l.b16 %v110
    %v389 = vunpack.c.h.b16 %v110
    %v390 = vunpack.c.l.b16 %v111
    %v391 = vunpack.c.h.b16 %v111
    %v392 = vunpack.c.l.b16 %v112
    %v393 = vunpack.c.h.b16 %v112
    %v394 = vunpack.c.l.b16 %v113
    %v395 = vunpack.c.h.b16 %v113
    %v396 = vunpack.c.l.b16 %v114
    %v397 = vunpack.c.h.b16 %v114
    %v398 = vunpack.c.l.b16 %v115
    %v399 = vunpack.c.h.b16 %v115
    %v400 = vunpack.c.l.b16 %v116
    %v401 = vunpack.c.h.b16 %v116
    %v402 = vunpack.c.l.b16 %v117
    %v403 = vunpack.c.h.b16 %v117
    %v404 = vunpack.c.l.b16 %v118
    %v405 = vunpack.c.h.b16 %v118
    %v406 = vunpack.c.l.b16 %v119
    %v407 = vunpack.c.h.b16 %v119
    %v408 = vunpack.c.l.b16 %v120
    %v409 = vunpack.c.h.b16 %v120
    %v410 = vunpack.c.l.b16 %v121
    %v411 = vunpack.c.h.b16 %v121
    %v412 = vunpack.c.l.b16 %v122
    %v413 = vunpack.c.h.b16 %v122
    %v414 = vunpack.c.l.b16 %v123
    %v415 = vunpack.c.h.b16 %v123
    %v416 = vunpack.c.l.b16 %v124
    %v417 = vunpack.c.h.b16 %v124
    %v418 = vunpack.c.l.b16 %v125
    %v419 = vunpack.c.h.b16 %v125
    %v420 = vunpack.c.l.b16 %v126
    %v421 = vunpack.c.h.b16 %v126
    %v422 = vunpack.c.l.b16 %v127
    %v423 = vunpack.c.h.b16 %v127
    %v424 = vunpack.c.l.b16 %v128
    %v425 = vunpack.c.h.b16 %v128
    %v426 = vunpack.c.l.b16 %v129
    %v427 = vunpack.c.h.b16 %v129
    %v428 = vunpack.c.l.b16 %v130
    %v429 = vunpack.c.h.b16 %v130
    %v430 = vunpack.c.l.b16 %v131
    %v431 = vunpack.c.h.b16 %v131
    %v432 = vunpack.c.l.b16 %v132
    %v433 = vunpack.c.h.b16 %v132
    %v434 = vunpack.c.l.b16 %v133
    %v435 = vunpack.c.h.b16 %v133
    %v436 = vunpack.c.l.b16 %v134
    %v437 = vunpack.c.h.b16 %v134
    %v438 = vunpack.c.l.b16 %v135
    %v439 = vunpack.c.h.b16 %v135
    %v440 = vunpack.c.l.b16 %v136
    %v441 = vunpack.c.h.b16 %v136
    %v442 = vunpack.c.l.b16 %v137
    %v443 = vunpack.c.h.b16 %v137
    %v444 = vunpack.c.l.b16 %v138
    %v445 = vunpack.c.h.b16 %v138
    %v446 = vunpack.c.l.b16 %v139
    %v447 = vunpack.c.h.b16 %v139
    %v448 = vunpack.c.l.b16 %v140
    %v449 = vunpack.c.h.b16 %v140
    %v450 = vunpack.c.l.b16 %v141
    %v451 = vunpack.c.h.b16 %v141
    %v452 = vunpack.c.l.b16 %v142
    %v453 = vunpack.c.h.b16 %v142
    %v454 = vunpack.c.l.b16 %v143
    %v455 = vunpack.c.h.b16 %v143
    %v456 = vunpack.c.l.b16 %v144
    %v457 = vunpack.c.h.b16 %v144
    %v458 = vunpack.c.l.b16 %v145
    %v459 = vunpack.c.h.b16 %v145
    %v460 = vunpack.c.l.b16 %v146
    %v461 = vunpack.c.h.b16 %v146
    %v462 = vunpack.c.l.b16 %v147
    %v463 = vunpack.c.h.b16 %v147
    %v464 = vunpack.c.l.b16 %v148
    %v465 = vunpack.c.h.b16 %v148
    %v466 = vunpack.c.l.b16 %v149
    %v467 = vunpack.c.h.b16 %v149
    %v468 = vunpack.c.l.b16 %v150
    %v469 = vunpack.c.h.b16 %v150
    %v470 = vunpack.c.l.b16 %v151
    %v471 = vunpack.c.h.b16 %v151
    %v472 = vunpack.c.l.b16 %v152
    %v473 = vunpack.c.h.b16 %v152
    %v474 = vunpack.c.l.b16 %v153
    %v475 = vunpack.c.h.b16 %v153
    %v476 = vunpack.c.l.b16 %v154
    %v477 = vunpack.c.h.b16 %v154
    %v478 = vunpack.c.l.b16 %v155
    %v479 = vunpack.c.h.b16 %v155
    %v480 = vunpack.c.l.b16 %v156
    %v481 = vunpack.c.h.b16 %v156
    %v482 = vunpack.c.l.b16 %v157
    %v483 = vunpack.c.h.b16 %v157
    %v484 = vunpack.c.l.b16 %v158
    %v485 = vunpack.c.h.b16 %v158
    %v486 = vunpack.c.l.b16 %v159
    %v487 = vunpack.c.h.b16 %v159
    %v488 = vunpack.c.l.b16 %v160
    %v489 = vunpack.c.h.b16 %v160
    %v490 = vunpack.c.l.b16 %v161
    %v491 = vunpack.c.h.b16 %v161
    %v492 = vunpack.c.l.b16 %v162
    %v493 = vunpack.c.h.b16 %v162
    %v494 = vunpack.c.l.b16 %v163
    %v495 = vunpack.c.h.b16 %v163
    %v496 = vunpack.c.l.b16 %v164
    %v497 = vunpack.c.h.b16 %v164
    %v498 = vunpack.c.l.b16 %v165
    %v499 = vunpack.c.h.b16 %v165
    %v500 = vunpack.c.l.b16 %v166
    %v501 = vunpack.c.h.b16 %v166
    %v502 = vunpack.c.l.b16 %v167
    %v503 = vunpack.c.h.b16 %v167
    %v504 = vunpack.c.l.b16 %v168
    %v505 = vunpack.c.h.b16 %v168
    %v506 = vunpack.c.l.b16 %v169
    %v507 = vunpack.c.h.b16 %v169
    %v508 = vunpack.c.l.b16 %v170
    %v509 = vunpack.c.h.b16 %v170
    %v510 = vunpack.c.l.b16 %v171
    %v511 = vunpack.c.h.b16 %v171
    %v512 = vunpack.c.l.b16 %v172
    %v513 = vunpack.c.h.b16 %v172
    %v514 = vunpack.c.l.b16 %v173
    %v515 = vunpack.c.h.b16 %v173
    %v516 = vunpack.c.l.b16 %v174
    %v517 = vunpack.c.h.b16 %v174
    %v518 = vunpack.c.l.b16 %v175
    %v519 = vunpack.c.h.b16 %v175
    %v520 = vunpack.c.l.b16 %v176
    %v521 = vunpack.c.h.b16 %v176
    %v522 = vunpack.c.l.b16 %v177
    %v523 = vunpack.c.h.b16 %v177
    %v524 = vunpack.c.l.b16 %v178
    %v525 = vunpack.c.h.b16 %v178
    %v526 = vunpack.c.l.b16 %v179
    %v527 = vunpack.c.h.b16 %v179
    %v528 = vunpack.c.l.b16 %v180
    %v529 = vunpack.c.h.b16 %v180
    %v530 = vunpack.c.l.b16 %v181
    %v531 = vunpack.c.h.b16 %v181
    %v532 = vunpack.c.l.b16 %v182
    %v533 = vunpack.c.h.b16 %v182
    %v534 = vunpack.c.l.b16 %v183
    %v535 = vunpack.c.h.b16 %v183
    %v536 = vunpack.c.l.b16 %v184
    %v537 = vunpack.c.h.b16 %v184
    %v538 = vunpack.c.l.b16 %v185
    %v539 = vunpack.c.h.b16 %v185
    %v540 = vunpack.c.l.b16 %v186
    %v541 = vunpack.c.h.b16 %v186
    %v542 = vunpack.c.l.b16 %v187
    %v543 = vunpack.c.h.b16 %v187
    %v544 = vunpack.c.l.b16 %v188
    %v545 = vunpack.c.h.b16 %v188
    %v546 = vunpack.c.l.b16 %v189
    %v547 = vunpack.c.h.b16 %v189
    %v548 = vunpack.c.l.b16 %v190
    %v549 = vunpack.c.h.b16 %v190
    %v550 = vunpack.c.l.b16 %v191
    %v551 = vunpack.c.h.b16 %v191
    %v552 = vunpack.c.l.b16 %v192
    %v553 = vunpack.c.h.b16 %v192
    %v554 = vunpack.c.l.b16 %v193
    %v555 = vunpack.c.h.b16 %v193
    %v556 = vunpack.c.l.b16 %v194
    %v557 = vunpack.c.h.b16 %v194
    %v558 = vunpack.c.l.b16 %v195
    %v559 = vunpack.c.h.b16 %v195
    %v560 = vunpack.c.l.b16 %v196
    %v561 = vunpack.c.h.b16 %v196
    %v562 = vunpack.c.l.b16 %v197
    %v563 = vunpack.c.h.b16 %v197
    %v564 = vunpack.c.l.b16 %v198
    %v565 = vunpack.c.h.b16 %v198
    %v566 = vunpack.c.l.b16 %v199
    %v567 = vunpack.c.h.b16 %v199
    %v568 = vunpack.c.l.b16 %v200
    %v569 = vunpack.c.h.b16 %v200
    %v570 = vunpack.c.l.b16 %v201
    %v571 = vunpack.c.h.b16 %v201
    %v572 = vunpack.c.l.b16 %v202
    %v573 = vunpack.c.h.b16 %v202
    %v574 = vunpack.c.l.b16 %v203
    %v575 = vunpack.c.h.b16 %v203
    %v576 = vunpack.c.l.b16 %v204
    %v577 = vunpack.c.h.b16 %v204
    %v578 = vunpack.c.l.b16 %v205
    %v579 = vunpack.c.h.b16 %v205
    %v580 = vunpack.c.l.b16 %v206
    %v581 = vunpack.c.h.b16 %v206
    %v582 = vunpack.c.l.b16 %v207
    %v583 = vunpack.c.h.b16 %v207
    %v584 = vunpack.c.l.b16 %v208
    %v585 = vunpack.c.h.b16 %v208
    %v586 = vunpack.c.l.b16 %v209
    %v587 = vunpack.c.h.b16 %v209
    %v588 = vunpack.c.l.b16 %v210
    %v589 = vunpack.c.h.b16 %v210
    %v590 = vunpack.c.l.b16 %v211
    %v591 = vunpack.c.h.b16 %v211
    %v592 = vunpack.c.l.b16 %v212
    %v593 = vunpack.c.h.b16 %v212
    %v594 = vunpack.c.l.b16 %v213
    %v595 = vunpack.c.h.b16 %v213
    %v596 = vunpack.c.l.b16 %v214
    %v597 = vunpack.c.h.b16 %v214
    %v598 = vunpack.c.l.b16 %v215
    %v599 = vunpack.c.h.b16 %v215
    %v600 = vunpack.c.l.b16 %v216
    %v601 = vunpack.c.h.b16 %v216
    %v602 = vpack.c.b16 %v350, %v346
    %v603 = vpack.c.b16 %v351, %v347
    %v604 = vpack.c.b16 %v352, %v348
    %v605 = vpack.c.b16 %v353, %v349
    %v606 = vpack.c.b16 %v358, %v354
    %v607 = vpack.c.b16 %v359, %v355
    %v608 = vpack.c.b16 %v360, %v356
    %v609 = vpack.c.b16 %v361, %v357
    %v610 = vpack.c.b16 %v366, %v362
    %v611 = vpack.c.b16 %v367, %v363
    %v612 = vpack.c.b16 %v368, %v364
    %v613 = vpack.c.b16 %v369, %v365
    %v614 = vpack.c.b16 %v374, %v370
    %v615 = vpack.c.b16 %v375, %v371
    %v616 = vpack.c.b16 %v376, %v372
    %v617 = vpack.c.b16 %v377, %v373
    %v618 = vpack.c.b16 %v382, %v378
    %v619 = vpack.c.b16 %v383, %v379
    %v620 = vpack.c.b16 %v384, %v380
    %v621 = vpack.c.b16 %v385, %v381
    %v622 = vpack.c.b16 %v390, %v386
    %v623 = vpack.c.b16 %v391, %v387
    %v624 = vpack.c.b16 %v392, %v388
    %v625 = vpack.c.b16 %v393, %v389
    %v626 = vpack.c.b16 %v398, %v394
    %v627 = vpack.c.b16 %v399, %v395
    %v628 = vpack.c.b16 %v400, %v396
    %v629 = vpack.c.b16 %v401, %v397
    %v630 = vpack.c.b16 %v406, %v402
    %v631 = vpack.c.b16 %v407, %v403
    %v632 = vpack.c.b16 %v408, %v404
    %v633 = vpack.c.b16 %v409, %v405
    %v634 = vpack.c.b16 %v414, %v410
    %v635 = vpack.c.b16 %v415, %v411
    %v636 = vpack.c.b16 %v416, %v412
    %v637 = vpack.c.b16 %v417, %v413
    %v638 = vpack.c.b16 %v422, %v418
    %v639 = vpack.c.b16 %v423, %v419
    %v640 = vpack.c.b16 %v424, %v420
    %v641 = vpack.c.b16 %v425, %v421
    %v642 = vpack.c.b16 %v430, %v426
    %v643 = vpack.c.b16 %v431, %v427
    %v644 = vpack.c.b16 %v432, %v428
    %v645 = vpack.c.b16 %v433, %v429
    %v646 = vpack.c.b16 %v438, %v434
    %v647 = vpack.c.b16 %v439, %v435
    %v648 = vpack.c.b16 %v440, %v436
    %v649 = vpack.c.b16 %v441, %v437
    %v650 = vpack.c.b16 %v446, %v442
    %v651 = vpack.c.b16 %v447, %v443
    %v652 = vpack.c.b16 %v448, %v444
    %v653 = vpack.c.b16 %v449, %v445
    %v654 = vpack.c.b16 %v454, %v450
    %v655 = vpack.c.b16 %v455, %v451
    %v656 = vpack.c.b16 %v456, %v452
    %v657 = vpack.c.b16 %v457, %v453
    %v658 = vpack.c.b16 %v462, %v458
    %v659 = vpack.c.b16 %v463, %v459
    %v660 = vpack.c.b16 %v464, %v460
    %v661 = vpack.c.b16 %v465, %v461
    %v662 = vpack.c.b16 %v470, %v466
    %v663 = vpack.c.b16 %v471, %v467
    %v664 = vpack.c.b16 %v472, %v468
    %v665 = vpack.c.b16 %v473, %v469
    %v666 = vpack.c.b16 %v478, %v474
    %v667 = vpack.c.b16 %v479, %v475
    %v668 = vpack.c.b16 %v480, %v476
    %v669 = vpack.c.b16 %v481, %v477
    %v670 = vpack.c.b16 %v486, %v482
    %v671 = vpack.c.b16 %v487, %v483
    %v672 = vpack.c.b16 %v488, %v484
    %v673 = vpack.c.b16 %v489, %v485
    %v674 = vpack.c.b16 %v494, %v490
    %v675 = vpack.c.b16 %v495, %v491
    %v676 = vpack.c.b16 %v496, %v492
    %v677 = vpack.c.b16 %v497, %v493
    %v678 = vpack.c.b16 %v502, %v498
    %v679 = vpack.c.b16 %v503, %v499
    %v680 = vpack.c.b16 %v504, %v500
    %v681 = vpack.c.b16 %v505, %v501
    %v682 = vpack.c.b16 %v510, %v506
    %v683 = vpack.c.b16 %v511, %v507
    %v684 = vpack.c.b16 %v512, %v508
    %v685 = vpack.c.b16 %v513, %v509
    %v686 = vpack.c.b16 %v518, %v514
    %v687 = vpack.c.b16 %v519, %v515
    %v688 = vpack.c.b16 %v520, %v516
    %v689 = vpack.c.b16 %v521, %v517
    %v690 = vpack.c.b16 %v526, %v522
    %v691 = vpack.c.b16 %v527, %v523
    %v692 = vpack.c.b16 %v528, %v524
    %v693 = vpack.c.b16 %v529, %v525
    %v694 = vpack.c.b16 %v534, %v530
    %v695 = vpack.c.b16 %v535, %v531
    %v696 = vpack.c.b16 %v536, %v532
    %v697 = vpack.c.b16 %v537, %v533
    %v698 = vpack.c.b16 %v542, %v538
    %v699 = vpack.c.b16 %v543, %v539
    %v700 = vpack.c.b16 %v544, %v540
    %v701 = vpack.c.b16 %v545, %v541
    %v702 = vpack.c.b16 %v550, %v546
    %v703 = vpack.c.b16 %v551, %v547
    %v704 = vpack.c.b16 %v552, %v548
    %v705 = vpack.c.b16 %v553, %v549
    %v706 = vpack.c.b16 %v558, %v554
    %v707 = vpack.c.b16 %v559, %v555
    %v708 = vpack.c.b16 %v560, %v556
    %v709 = vpack.c.b16 %v561, %v557
    %v710 = vpack.c.b16 %v566, %v562
    %v711 = vpack.c.b16 %v567, %v563
    %v712 = vpack.c.b16 %v568, %v564
    %v713 = vpack.c.b16 %v569, %v565
    %v714 = vpack.c.b16 %v574, %v570
    %v715 = vpack.c.b16 %v575, %v571
    %v716 = vpack.c.b16 %v576, %v572
    %v717 = vpack.c.b16 %v577, %v573
    %v718 = vpack.c.b16 %v582, %v578
    %v719 = vpack.c.b16 %v583, %v579
    %v720 = vpack.c.b16 %v584, %v580
    %v721 = vpack.c.b16 %v585, %v581
    %v722 = vpack.c.b16 %v590, %v586
    %v723 = vpack.c.b16 %v591, %v587
    %v724 = vpack.c.b16 %v592, %v588
    %v725 = vpack.c.b16 %v593, %v589
    %v726 = vpack.c.b16 %v598, %v594
    %v727 = vpack.c.b16 %v599, %v595
    %v728 = vpack.c.b16 %v600, %v596
    %v729 = vpack.c.b16 %v601, %v597
    %v859 = vperm.slane %v217, 0
    %v860 = vperm.slane %v217, 1
    %v861 = vperm.slane %v217, 2
    %v862 = vperm.slane %v217, 3
    %867 = vmatpush.bf16.msra.mxu0 %v630
    %868 = vmatpush.bf16.msra.mxu0 %v626
    %869 = vmatpush.bf16.msra.mxu0 %v622
    %870 = vmatpush.bf16.msra.mxu0 %v618
    %871 = vmatpush.bf16.msra.mxu0 %v614
    %872 = vmatpush.bf16.msra.mxu0 %v610
    %873 = vmatpush.bf16.msra.mxu0 %v606
    %874 = vmatpush.bf16.msra.mxu0 %v602
    %875 = vmatmul.bf16.gmra.mxu0 %v85
    %v876 = vpop.f32.mrf.mxu0
    %v877 = vadd.f32 %v859, %v876
    %v878 = vpop.f32.mrf.mxu0
    %879 = vdwg.mxu0
    %880 = vmatpush.bf16.msra.mxu0 %v662
    %881 = vmatpush.bf16.msra.mxu0 %v658
    %882 = vmatpush.bf16.msra.mxu0 %v654
    %883 = vmatpush.bf16.msra.mxu0 %v650
    %884 = vmatpush.bf16.msra.mxu0 %v646
    %885 = vmatpush.bf16.msra.mxu0 %v642
    %886 = vmatpush.bf16.msra.mxu0 %v638
    %887 = vmatpush.bf16.msra.mxu0 %v634
    %888 = vmatmul.bf16.gmra.mxu0 %v86
    %v889 = vpop.f32.mrf.mxu0
    %v890 = vadd.f32 %v877, %v889
    %v891 = vpop.f32.mrf.mxu0
    %892 = vdwg.mxu0
    %893 = vmatpush.bf16.msra.mxu0 %v694
    %894 = vmatpush.bf16.msra.mxu0 %v690
    %895 = vmatpush.bf16.msra.mxu0 %v686
    %896 = vmatpush.bf16.msra.mxu0 %v682
    %897 = vmatpush.bf16.msra.mxu0 %v678
    %898 = vmatpush.bf16.msra.mxu0 %v674
    %899 = vmatpush.bf16.msra.mxu0 %v670
    %900 = vmatpush.bf16.msra.mxu0 %v666
    %901 = vmatmul.bf16.gmra.mxu0 %v87
    %v902 = vpop.f32.mrf.mxu0
    %v903 = vadd.f32 %v890, %v902
    %v904 = vpop.f32.mrf.mxu0
    %905 = vdwg.mxu0
    %906 = vmatpush.bf16.msra.mxu0 %v726
    %907 = vmatpush.bf16.msra.mxu0 %v722
    %908 = vmatpush.bf16.msra.mxu0 %v718
    %909 = vmatpush.bf16.msra.mxu0 %v714
    %910 = vmatpush.bf16.msra.mxu0 %v710
    %911 = vmatpush.bf16.msra.mxu0 %v706
    %912 = vmatpush.bf16.msra.mxu0 %v702
    %913 = vmatpush.bf16.msra.mxu0 %v698
    %914 = vmatmul.bf16.gmra.mxu0 %v88
    %v915 = vpop.f32.mrf.mxu0
    %v916 = vadd.f32 %v903, %v915
    %v917 = vpop.f32.mrf.mxu0
    %918 = vdwg.mxu0
    %919 = vmatpush.bf16.msra.mxu0 %v631
    %920 = vmatpush.bf16.msra.mxu0 %v627
    %921 = vmatpush.bf16.msra.mxu0 %v623
    %922 = vmatpush.bf16.msra.mxu0 %v619
    %923 = vmatpush.bf16.msra.mxu0 %v615
    %924 = vmatpush.bf16.msra.mxu0 %v611
    %925 = vmatpush.bf16.msra.mxu0 %v607
    %926 = vmatpush.bf16.msra.mxu0 %v603
    %927 = vmatmul.bf16.gmra.mxu0 %v85
    %v928 = vpop.f32.mrf.mxu0
    %v929 = vadd.f32 %v860, %v928
    %v930 = vpop.f32.mrf.mxu0
    %931 = vdwg.mxu0
    %932 = vmatpush.bf16.msra.mxu0 %v663
    %933 = vmatpush.bf16.msra.mxu0 %v659
    %934 = vmatpush.bf16.msra.mxu0 %v655
    %935 = vmatpush.bf16.msra.mxu0 %v651
    %936 = vmatpush.bf16.msra.mxu0 %v647
    %937 = vmatpush.bf16.msra.mxu0 %v643
    %938 = vmatpush.bf16.msra.mxu0 %v639
    %939 = vmatpush.bf16.msra.mxu0 %v635
    %940 = vmatmul.bf16.gmra.mxu0 %v86
    %v941 = vpop.f32.mrf.mxu0
    %v942 = vadd.f32 %v929, %v941
    %v943 = vpop.f32.mrf.mxu0
    %944 = vdwg.mxu0
    %945 = vmatpush.bf16.msra.mxu0 %v695
    %946 = vmatpush.bf16.msra.mxu0 %v691
    %947 = vmatpush.bf16.msra.mxu0 %v687
    %948 = vmatpush.bf16.msra.mxu0 %v683
    %949 = vmatpush.bf16.msra.mxu0 %v679
    %950 = vmatpush.bf16.msra.mxu0 %v675
    %951 = vmatpush.bf16.msra.mxu0 %v671
    %952 = vmatpush.bf16.msra.mxu0 %v667
    %953 = vmatmul.bf16.gmra.mxu0 %v87
    %v954 = vpop.f32.mrf.mxu0
    %v955 = vadd.f32 %v942, %v954
    %v956 = vpop.f32.mrf.mxu0
    %957 = vdwg.mxu0
    %958 = vmatpush.bf16.msra.mxu0 %v727
    %959 = vmatpush.bf16.msra.mxu0 %v723
    %960 = vmatpush.bf16.msra.mxu0 %v719
    %961 = vmatpush.bf16.msra.mxu0 %v715
    %962 = vmatpush.bf16.msra.mxu0 %v711
    %963 = vmatpush.bf16.msra.mxu0 %v707
    %964 = vmatpush.bf16.msra.mxu0 %v703
    %965 = vmatpush.bf16.msra.mxu0 %v699
    %966 = vmatmul.bf16.gmra.mxu0 %v88
    %v967 = vpop.f32.mrf.mxu0
    %v968 = vadd.f32 %v955, %v967
    %v969 = vpop.f32.mrf.mxu0
    %970 = vdwg.mxu0
    %971 = vmatpush.bf16.msra.mxu0 %v632
    %972 = vmatpush.bf16.msra.mxu0 %v628
    %973 = vmatpush.bf16.msra.mxu0 %v624
    %974 = vmatpush.bf16.msra.mxu0 %v620
    %975 = vmatpush.bf16.msra.mxu0 %v616
    %976 = vmatpush.bf16.msra.mxu0 %v612
    %977 = vmatpush.bf16.msra.mxu0 %v608
    %978 = vmatpush.bf16.msra.mxu0 %v604
    %979 = vmatmul.bf16.gmra.mxu0 %v85
    %v980 = vpop.f32.mrf.mxu0
    %v981 = vadd.f32 %v861, %v980
    %v982 = vpop.f32.mrf.mxu0
    %983 = vdwg.mxu0
    %984 = vmatpush.bf16.msra.mxu0 %v664
    %985 = vmatpush.bf16.msra.mxu0 %v660
    %986 = vmatpush.bf16.msra.mxu0 %v656
    %987 = vmatpush.bf16.msra.mxu0 %v652
    %988 = vmatpush.bf16.msra.mxu0 %v648
    %989 = vmatpush.bf16.msra.mxu0 %v644
    %990 = vmatpush.bf16.msra.mxu0 %v640
    %991 = vmatpush.bf16.msra.mxu0 %v636
    %992 = vmatmul.bf16.gmra.mxu0 %v86
    %v993 = vpop.f32.mrf.mxu0
    %v994 = vadd.f32 %v981, %v993
    %v995 = vpop.f32.mrf.mxu0
    %996 = vdwg.mxu0
    %997 = vmatpush.bf16.msra.mxu0 %v696
    %998 = vmatpush.bf16.msra.mxu0 %v692
    %999 = vmatpush.bf16.msra.mxu0 %v688
    %1000 = vmatpush.bf16.msra.mxu0 %v684
    %1001 = vmatpush.bf16.msra.mxu0 %v680
    %1002 = vmatpush.bf16.msra.mxu0 %v676
    %1003 = vmatpush.bf16.msra.mxu0 %v672
    %1004 = vmatpush.bf16.msra.mxu0 %v668
    %1005 = vmatmul.bf16.gmra.mxu0 %v87
    %v1006 = vpop.f32.mrf.mxu0
    %v1007 = vadd.f32 %v994, %v1006
    %v1008 = vpop.f32.mrf.mxu0
    %1009 = vdwg.mxu0
    %1010 = vmatpush.bf16.msra.mxu0 %v728
    %1011 = vmatpush.bf16.msra.mxu0 %v724
    %1012 = vmatpush.bf16.msra.mxu0 %v720
    %1013 = vmatpush.bf16.msra.mxu0 %v716
    %1014 = vmatpush.bf16.msra.mxu0 %v712
    %1015 = vmatpush.bf16.msra.mxu0 %v708
    %1016 = vmatpush.bf16.msra.mxu0 %v704
    %1017 = vmatpush.bf16.msra.mxu0 %v700
    %1018 = vmatmul.bf16.gmra.mxu0 %v88
    %v1019 = vpop.f32.mrf.mxu0
    %v1020 = vadd.f32 %v1007, %v1019
    %v1021 = vpop.f32.mrf.mxu0
    %1022 = vdwg.mxu0
    %1023 = vmatpush.bf16.msra.mxu0 %v633
    %1024 = vmatpush.bf16.msra.mxu0 %v629
    %1025 = vmatpush.bf16.msra.mxu0 %v625
    %1026 = vmatpush.bf16.msra.mxu0 %v621
    %1027 = vmatpush.bf16.msra.mxu0 %v617
    %1028 = vmatpush.bf16.msra.mxu0 %v613
    %1029 = vmatpush.bf16.msra.mxu0 %v609
    %1030 = vmatpush.bf16.msra.mxu0 %v605
    %1031 = vmatmul.bf16.gmra.mxu0 %v85
    %v1032 = vpop.f32.mrf.mxu0
    %v1033 = vadd.f32 %v862, %v1032
    %v1034 = vpop.f32.mrf.mxu0
    %1035 = vdwg.mxu0
    %1036 = vmatpush.bf16.msra.mxu0 %v665
    %1037 = vmatpush.bf16.msra.mxu0 %v661
    %1038 = vmatpush.bf16.msra.mxu0 %v657
    %1039 = vmatpush.bf16.msra.mxu0 %v653
    %1040 = vmatpush.bf16.msra.mxu0 %v649
    %1041 = vmatpush.bf16.msra.mxu0 %v645
    %1042 = vmatpush.bf16.msra.mxu0 %v641
    %1043 = vmatpush.bf16.msra.mxu0 %v637
    %1044 = vmatmul.bf16.gmra.mxu0 %v86
    %v1045 = vpop.f32.mrf.mxu0
    %v1046 = vadd.f32 %v1033, %v1045
    %v1047 = vpop.f32.mrf.mxu0
    %1048 = vdwg.mxu0
    %1049 = vmatpush.bf16.msra.mxu0 %v697
    %1050 = vmatpush.bf16.msra.mxu0 %v693
    %1051 = vmatpush.bf16.msra.mxu0 %v689
    %1052 = vmatpush.bf16.msra.mxu0 %v685
    %1053 = vmatpush.bf16.msra.mxu0 %v681
    %1054 = vmatpush.bf16.msra.mxu0 %v677
    %1055 = vmatpush.bf16.msra.mxu0 %v673
    %1056 = vmatpush.bf16.msra.mxu0 %v669
    %1057 = vmatmul.bf16.gmra.mxu0 %v87
    %v1058 = vpop.f32.mrf.mxu0
    %v1059 = vadd.f32 %v1046, %v1058
    %v1060 = vpop.f32.mrf.mxu0
    %1061 = vdwg.mxu0
    %1062 = vmatpush.bf16.msra.mxu0 %v729
    %1063 = vmatpush.bf16.msra.mxu0 %v725
    %1064 = vmatpush.bf16.msra.mxu0 %v721
    %1065 = vmatpush.bf16.msra.mxu0 %v717
    %1066 = vmatpush.bf16.msra.mxu0 %v713
    %1067 = vmatpush.bf16.msra.mxu0 %v709
    %1068 = vmatpush.bf16.msra.mxu0 %v705
    %1069 = vmatpush.bf16.msra.mxu0 %v701
    %1070 = vmatmul.bf16.gmra.mxu0 %v88
    %v1071 = vpop.f32.mrf.mxu0
    %v1072 = vadd.f32 %v1059, %v1071
    %v1073 = vpop.f32.mrf.mxu0
    %1074 = vdwg.mxu0
    %v1075 = vmax.f32 %v916, 0.0
    %v1076 = vmax.f32 %v968, 0.0
    %v1077 = vmax.f32 %v1020, 0.0
    %v1078 = vmax.f32 %v1072, 0.0
    %v1079 = vpack.c.bf16 %v1075, %v1075
    %v1080 = vpack.c.bf16 %v1076, %v1076
    %v1081 = vpack.c.bf16 %v1077, %v1077
    %v1082 = vpack.c.bf16 %v1078, %v1078
    %v1083 = vld [vmem:[#allocation5] sm:$0xff]
    %v1084 = vld [vmem:[#allocation5 + $0x8] sm:$0xff]
    %v1085 = vld [vmem:[#allocation5 + $0x10] sm:$0xff]
    %v1086 = vld [vmem:[#allocation5 + $0x18] sm:$0xff]
    %v1087 = vld [vmem:[#allocation5 + $0x20] sm:$0xff]
    %v1088 = vld [vmem:[#allocation5 + $0x28] sm:$0xff]
    %v1089 = vld [vmem:[#allocation5 + $0x30] sm:$0xff]
    %v1090 = vld [vmem:[#allocation5 + $0x38] sm:$0xff]
    %v1091 = vld [vmem:[#allocation5 + $0x40] sm:$0xff]
    %v1092 = vld [vmem:[#allocation5 + $0x48] sm:$0xff]
    %v1093 = vld [vmem:[#allocation5 + $0x50] sm:$0xff]
    %v1094 = vld [vmem:[#allocation5 + $0x58] sm:$0xff]
    %v1095 = vld [vmem:[#allocation5 + $0x60] sm:$0xff]
    %v1096 = vld [vmem:[#allocation5 + $0x68] sm:$0xff]
    %v1097 = vld [vmem:[#allocation5 + $0x70] sm:$0xff]
    %v1098 = vld [vmem:[#allocation5 + $0x78] sm:$0xff]
    %v1099 = vld [vmem:[#allocation5 + $0x80] sm:$0xff]
    %v1100 = vld [vmem:[#allocation5 + $0x88] sm:$0xff]
    %v1101 = vld [vmem:[#allocation5 + $0x90] sm:$0xff]
    %v1102 = vld [vmem:[#allocation5 + $0x98] sm:$0xff]
    %v1103 = vld [vmem:[#allocation5 + $0xa0] sm:$0xff]
    %v1104 = vld [vmem:[#allocation5 + $0xa8] sm:$0xff]
    %v1105 = vld [vmem:[#allocation5 + $0xb0] sm:$0xff]
    %v1106 = vld [vmem:[#allocation5 + $0xb8] sm:$0xff]
    %v1107 = vld [vmem:[#allocation5 + $0xc0] sm:$0xff]
    %v1108 = vld [vmem:[#allocation5 + $0xc8] sm:$0xff]
    %v1109 = vld [vmem:[#allocation5 + $0xd0] sm:$0xff]
    %v1110 = vld [vmem:[#allocation5 + $0xd8] sm:$0xff]
    %v1111 = vld [vmem:[#allocation5 + $0xe0] sm:$0xff]
    %v1112 = vld [vmem:[#allocation5 + $0xe8] sm:$0xff]
    %v1113 = vld [vmem:[#allocation5 + $0xf0] sm:$0xff]
    %v1114 = vld [vmem:[#allocation5 + $0xf8] sm:$0xff]
    %v1115 = vld [vmem:[#allocation5 + $0x100] sm:$0xff]
    %v1116 = vld [vmem:[#allocation5 + $0x108] sm:$0xff]
    %v1117 = vld [vmem:[#allocation5 + $0x110] sm:$0xff]
    %v1118 = vld [vmem:[#allocation5 + $0x118] sm:$0xff]
    %v1119 = vld [vmem:[#allocation5 + $0x120] sm:$0xff]
    %v1120 = vld [vmem:[#allocation5 + $0x128] sm:$0xff]
    %v1121 = vld [vmem:[#allocation5 + $0x130] sm:$0xff]
    %v1122 = vld [vmem:[#allocation5 + $0x138] sm:$0xff]
    %v1123 = vld [vmem:[#allocation5 + $0x140] sm:$0xff]
    %v1124 = vld [vmem:[#allocation5 + $0x148] sm:$0xff]
    %v1125 = vld [vmem:[#allocation5 + $0x150] sm:$0xff]
    %v1126 = vld [vmem:[#allocation5 + $0x158] sm:$0xff]
    %v1127 = vld [vmem:[#allocation5 + $0x160] sm:$0xff]
    %v1128 = vld [vmem:[#allocation5 + $0x168] sm:$0xff]
    %v1129 = vld [vmem:[#allocation5 + $0x170] sm:$0xff]
    %v1130 = vld [vmem:[#allocation5 + $0x178] sm:$0xff]
    %v1131 = vld [vmem:[#allocation5 + $0x180] sm:$0xff]
    %v1132 = vld [vmem:[#allocation5 + $0x188] sm:$0xff]
    %v1133 = vld [vmem:[#allocation5 + $0x190] sm:$0xff]
    %v1134 = vld [vmem:[#allocation5 + $0x198] sm:$0xff]
    %v1135 = vld [vmem:[#allocation5 + $0x1a0] sm:$0xff]
    %v1136 = vld [vmem:[#allocation5 + $0x1a8] sm:$0xff]
    %v1137 = vld [vmem:[#allocation5 + $0x1b0] sm:$0xff]
    %v1138 = vld [vmem:[#allocation5 + $0x1b8] sm:$0xff]
    %v1139 = vld [vmem:[#allocation5 + $0x1c0] sm:$0xff]
    %v1140 = vld [vmem:[#allocation5 + $0x1c8] sm:$0xff]
    %v1141 = vld [vmem:[#allocation5 + $0x1d0] sm:$0xff]
    %v1142 = vld [vmem:[#allocation5 + $0x1d8] sm:$0xff]
    %v1143 = vld [vmem:[#allocation5 + $0x1e0] sm:$0xff]
    %v1144 = vld [vmem:[#allocation5 + $0x1e8] sm:$0xff]
    %v1145 = vld [vmem:[#allocation5 + $0x1f0] sm:$0xff]
    %v1146 = vld [vmem:[#allocation5 + $0x1f8] sm:$0xff]
    %v1147 = vld [vmem:[%s4] sm:$0x3]
    %v1212 = vunpack.c.l.b16 %v1083
    %v1213 = vunpack.c.h.b16 %v1083
    %v1214 = vunpack.c.l.b16 %v1084
    %v1215 = vunpack.c.h.b16 %v1084
    %v1216 = vunpack.c.l.b16 %v1085
    %v1217 = vunpack.c.h.b16 %v1085
    %v1218 = vunpack.c.l.b16 %v1086
    %v1219 = vunpack.c.h.b16 %v1086
    %v1220 = vunpack.c.l.b16 %v1087
    %v1221 = vunpack.c.h.b16 %v1087
    %v1222 = vunpack.c.l.b16 %v1088
    %v1223 = vunpack.c.h.b16 %v1088
    %v1224 = vunpack.c.l.b16 %v1089
    %v1225 = vunpack.c.h.b16 %v1089
    %v1226 = vunpack.c.l.b16 %v1090
    %v1227 = vunpack.c.h.b16 %v1090
    %v1228 = vunpack.c.l.b16 %v1091
    %v1229 = vunpack.c.h.b16 %v1091
    %v1230 = vunpack.c.l.b16 %v1092
    %v1231 = vunpack.c.h.b16 %v1092
    %v1232 = vunpack.c.l.b16 %v1093
    %v1233 = vunpack.c.h.b16 %v1093
    %v1234 = vunpack.c.l.b16 %v1094
    %v1235 = vunpack.c.h.b16 %v1094
    %v1236 = vunpack.c.l.b16 %v1095
    %v1237 = vunpack.c.h.b16 %v1095
    %v1238 = vunpack.c.l.b16 %v1096
    %v1239 = vunpack.c.h.b16 %v1096
    %v1240 = vunpack.c.l.b16 %v1097
    %v1241 = vunpack.c.h.b16 %v1097
    %v1242 = vunpack.c.l.b16 %v1098
    %v1243 = vunpack.c.h.b16 %v1098
    %v1244 = vunpack.c.l.b16 %v1099
    %v1245 = vunpack.c.h.b16 %v1099
    %v1246 = vunpack.c.l.b16 %v1100
    %v1247 = vunpack.c.h.b16 %v1100
    %v1248 = vunpack.c.l.b16 %v1101
    %v1249 = vunpack.c.h.b16 %v1101
    %v1250 = vunpack.c.l.b16 %v1102
    %v1251 = vunpack.c.h.b16 %v1102
    %v1252 = vunpack.c.l.b16 %v1103
    %v1253 = vunpack.c.h.b16 %v1103
    %v1254 = vunpack.c.l.b16 %v1104
    %v1255 = vunpack.c.h.b16 %v1104
    %v1256 = vunpack.c.l.b16 %v1105
    %v1257 = vunpack.c.h.b16 %v1105
    %v1258 = vunpack.c.l.b16 %v1106
    %v1259 = vunpack.c.h.b16 %v1106
    %v1260 = vunpack.c.l.b16 %v1107
    %v1261 = vunpack.c.h.b16 %v1107
    %v1262 = vunpack.c.l.b16 %v1108
    %v1263 = vunpack.c.h.b16 %v1108
    %v1264 = vunpack.c.l.b16 %v1109
    %v1265 = vunpack.c.h.b16 %v1109
    %v1266 = vunpack.c.l.b16 %v1110
    %v1267 = vunpack.c.h.b16 %v1110
    %v1268 = vunpack.c.l.b16 %v1111
    %v1269 = vunpack.c.h.b16 %v1111
    %v1270 = vunpack.c.l.b16 %v1112
    %v1271 = vunpack.c.h.b16 %v1112
    %v1272 = vunpack.c.l.b16 %v1113
    %v1273 = vunpack.c.h.b16 %v1113
    %v1274 = vunpack.c.l.b16 %v1114
    %v1275 = vunpack.c.h.b16 %v1114
    %v1276 = vunpack.c.l.b16 %v1115
    %v1277 = vunpack.c.h.b16 %v1115
    %v1278 = vunpack.c.l.b16 %v1116
    %v1279 = vunpack.c.h.b16 %v1116
    %v1280 = vunpack.c.l.b16 %v1117
    %v1281 = vunpack.c.h.b16 %v1117
    %v1282 = vunpack.c.l.b16 %v1118
    %v1283 = vunpack.c.h.b16 %v1118
    %v1284 = vunpack.c.l.b16 %v1119
    %v1285 = vunpack.c.h.b16 %v1119
    %v1286 = vunpack.c.l.b16 %v1120
    %v1287 = vunpack.c.h.b16 %v1120
    %v1288 = vunpack.c.l.b16 %v1121
    %v1289 = vunpack.c.h.b16 %v1121
    %v1290 = vunpack.c.l.b16 %v1122
    %v1291 = vunpack.c.h.b16 %v1122
    %v1292 = vunpack.c.l.b16 %v1123
    %v1293 = vunpack.c.h.b16 %v1123
    %v1294 = vunpack.c.l.b16 %v1124
    %v1295 = vunpack.c.h.b16 %v1124
    %v1296 = vunpack.c.l.b16 %v1125
    %v1297 = vunpack.c.h.b16 %v1125
    %v1298 = vunpack.c.l.b16 %v1126
    %v1299 = vunpack.c.h.b16 %v1126
    %v1300 = vunpack.c.l.b16 %v1127
    %v1301 = vunpack.c.h.b16 %v1127
    %v1302 = vunpack.c.l.b16 %v1128
    %v1303 = vunpack.c.h.b16 %v1128
    %v1304 = vunpack.c.l.b16 %v1129
    %v1305 = vunpack.c.h.b16 %v1129
    %v1306 = vunpack.c.l.b16 %v1130
    %v1307 = vunpack.c.h.b16 %v1130
    %v1308 = vunpack.c.l.b16 %v1131
    %v1309 = vunpack.c.h.b16 %v1131
    %v1310 = vunpack.c.l.b16 %v1132
    %v1311 = vunpack.c.h.b16 %v1132
    %v1312 = vunpack.c.l.b16 %v1133
    %v1313 = vunpack.c.h.b16 %v1133
    %v1314 = vunpack.c.l.b16 %v1134
    %v1315 = vunpack.c.h.b16 %v1134
    %v1316 = vunpack.c.l.b16 %v1135
    %v1317 = vunpack.c.h.b16 %v1135
    %v1318 = vunpack.c.l.b16 %v1136
    %v1319 = vunpack.c.h.b16 %v1136
    %v1320 = vunpack.c.l.b16 %v1137
    %v1321 = vunpack.c.h.b16 %v1137
    %v1322 = vunpack.c.l.b16 %v1138
    %v1323 = vunpack.c.h.b16 %v1138
    %v1324 = vunpack.c.l.b16 %v1139
    %v1325 = vunpack.c.h.b16 %v1139
    %v1326 = vunpack.c.l.b16 %v1140
    %v1327 = vunpack.c.h.b16 %v1140
    %v1328 = vunpack.c.l.b16 %v1141
    %v1329 = vunpack.c.h.b16 %v1141
    %v1330 = vunpack.c.l.b16 %v1142
    %v1331 = vunpack.c.h.b16 %v1142
    %v1332 = vunpack.c.l.b16 %v1143
    %v1333 = vunpack.c.h.b16 %v1143
    %v1334 = vunpack.c.l.b16 %v1144
    %v1335 = vunpack.c.h.b16 %v1144
    %v1336 = vunpack.c.l.b16 %v1145
    %v1337 = vunpack.c.h.b16 %v1145
    %v1338 = vunpack.c.l.b16 %v1146
    %v1339 = vunpack.c.h.b16 %v1146
    %v1340 = vpack.c.b16 %v1214, %v1212
    %v1341 = vpack.c.b16 %v1215, %v1213
    %v1342 = vpack.c.b16 %v1218, %v1216
    %v1343 = vpack.c.b16 %v1219, %v1217
    %v1344 = vpack.c.b16 %v1222, %v1220
    %v1345 = vpack.c.b16 %v1223, %v1221
    %v1346 = vpack.c.b16 %v1226, %v1224
    %v1347 = vpack.c.b16 %v1227, %v1225
    %v1348 = vpack.c.b16 %v1230, %v1228
    %v1349 = vpack.c.b16 %v1231, %v1229
    %v1350 = vpack.c.b16 %v1234, %v1232
    %v1351 = vpack.c.b16 %v1235, %v1233
    %v1352 = vpack.c.b16 %v1238, %v1236
    %v1353 = vpack.c.b16 %v1239, %v1237
    %v1354 = vpack.c.b16 %v1242, %v1240
    %v1355 = vpack.c.b16 %v1243, %v1241
    %v1356 = vpack.c.b16 %v1246, %v1244
    %v1357 = vpack.c.b16 %v1247, %v1245
    %v1358 = vpack.c.b16 %v1250, %v1248
    %v1359 = vpack.c.b16 %v1251, %v1249
    %v1360 = vpack.c.b16 %v1254, %v1252
    %v1361 = vpack.c.b16 %v1255, %v1253
    %v1362 = vpack.c.b16 %v1258, %v1256
    %v1363 = vpack.c.b16 %v1259, %v1257
    %v1364 = vpack.c.b16 %v1262, %v1260
    %v1365 = vpack.c.b16 %v1263, %v1261
    %v1366 = vpack.c.b16 %v1266, %v1264
    %v1367 = vpack.c.b16 %v1267, %v1265
    %v1368 = vpack.c.b16 %v1270, %v1268
    %v1369 = vpack.c.b16 %v1271, %v1269
    %v1370 = vpack.c.b16 %v1274, %v1272
    %v1371 = vpack.c.b16 %v1275, %v1273
    %v1372 = vpack.c.b16 %v1278, %v1276
    %v1373 = vpack.c.b16 %v1279, %v1277
    %v1374 = vpack.c.b16 %v1282, %v1280
    %v1375 = vpack.c.b16 %v1283, %v1281
    %v1376 = vpack.c.b16 %v1286, %v1284
    %v1377 = vpack.c.b16 %v1287, %v1285
    %v1378 = vpack.c.b16 %v1290, %v1288
    %v1379 = vpack.c.b16 %v1291, %v1289
    %v1380 = vpack.c.b16 %v1294, %v1292
    %v1381 = vpack.c.b16 %v1295, %v1293
    %v1382 = vpack.c.b16 %v1298, %v1296
    %v1383 = vpack.c.b16 %v1299, %v1297
    %v1384 = vpack.c.b16 %v1302, %v1300
    %v1385 = vpack.c.b16 %v1303, %v1301
    %v1386 = vpack.c.b16 %v1306, %v1304
    %v1387 = vpack.c.b16 %v1307, %v1305
    %v1388 = vpack.c.b16 %v1310, %v1308
    %v1389 = vpack.c.b16 %v1311, %v1309
    %v1390 = vpack.c.b16 %v1314, %v1312
    %v1391 = vpack.c.b16 %v1315, %v1313
    %v1392 = vpack.c.b16 %v1318, %v1316
    %v1393 = vpack.c.b16 %v1319, %v1317
    %v1394 = vpack.c.b16 %v1322, %v1320
    %v1395 = vpack.c.b16 %v1323, %v1321
    %v1396 = vpack.c.b16 %v1326, %v1324
    %v1397 = vpack.c.b16 %v1327, %v1325
    %v1398 = vpack.c.b16 %v1330, %v1328
    %v1399 = vpack.c.b16 %v1331, %v1329
    %v1400 = vpack.c.b16 %v1334, %v1332
    %v1401 = vpack.c.b16 %v1335, %v1333
    %v1402 = vpack.c.b16 %v1338, %v1336
    %v1403 = vpack.c.b16 %v1339, %v1337
    %v1469 = vperm.slane %v1147, 0
    %v1470 = vperm.slane %v1147, 1
    %1473 = vmatpush.bf16.msra.mxu0 %v1354
    %1474 = vmatpush.bf16.msra.mxu0 %v1352
    %1475 = vmatpush.bf16.msra.mxu0 %v1350
    %1476 = vmatpush.bf16.msra.mxu0 %v1348
    %1477 = vmatpush.bf16.msra.mxu0 %v1346
    %1478 = vmatpush.bf16.msra.mxu0 %v1344
    %1479 = vmatpush.bf16.msra.mxu0 %v1342
    %1480 = vmatpush.bf16.msra.mxu0 %v1340
    %1481 = vmatmul.bf16.gmra.mxu0 %v1079
    %v1482 = vpop.f32.mrf.mxu0
    %v1483 = vadd.f32 %v1469, %v1482
    %v1484 = vpop.f32.mrf.mxu0
    %1485 = vdwg.mxu0
    %1486 = vmatpush.bf16.msra.mxu0 %v1370
    %1487 = vmatpush.bf16.msra.mxu0 %v1368
    %1488 = vmatpush.bf16.msra.mxu0 %v1366
    %1489 = vmatpush.bf16.msra.mxu0 %v1364
    %1490 = vmatpush.bf16.msra.mxu0 %v1362
    %1491 = vmatpush.bf16.msra.mxu0 %v1360
    %1492 = vmatpush.bf16.msra.mxu0 %v1358
    %1493 = vmatpush.bf16.msra.mxu0 %v1356
    %1494 = vmatmul.bf16.gmra.mxu0 %v1080
    %v1495 = vpop.f32.mrf.mxu0
    %v1496 = vadd.f32 %v1483, %v1495
    %v1497 = vpop.f32.mrf.mxu0
    %1498 = vdwg.mxu0
    %1499 = vmatpush.bf16.msra.mxu0 %v1386
    %1500 = vmatpush.bf16.msra.mxu0 %v1384
    %1501 = vmatpush.bf16.msra.mxu0 %v1382
    %1502 = vmatpush.bf16.msra.mxu0 %v1380
    %1503 = vmatpush.bf16.msra.mxu0 %v1378
    %1504 = vmatpush.bf16.msra.mxu0 %v1376
    %1505 = vmatpush.bf16.msra.mxu0 %v1374
    %1506 = vmatpush.bf16.msra.mxu0 %v1372
    %1507 = vmatmul.bf16.gmra.mxu0 %v1081
    %v1508 = vpop.f32.mrf.mxu0
    %v1509 = vadd.f32 %v1496, %v1508
    %v1510 = vpop.f32.mrf.mxu0
    %1511 = vdwg.mxu0
    %1512 = vmatpush.bf16.msra.mxu0 %v1402
    %1513 = vmatpush.bf16.msra.mxu0 %v1400
    %1514 = vmatpush.bf16.msra.mxu0 %v1398
    %1515 = vmatpush.bf16.msra.mxu0 %v1396
    %1516 = vmatpush.bf16.msra.mxu0 %v1394
    %1517 = vmatpush.bf16.msra.mxu0 %v1392
    %1518 = vmatpush.bf16.msra.mxu0 %v1390
    %1519 = vmatpush.bf16.msra.mxu0 %v1388
    %1520 = vmatmul.bf16.gmra.mxu0 %v1082
    %v1521 = vpop.f32.mrf.mxu0
    %v1522 = vadd.f32 %v1509, %v1521
    %v1523 = vpop.f32.mrf.mxu0
    %1524 = vdwg.mxu0
    %1525 = vmatpush.bf16.msra.mxu0 %v1355
    %1526 = vmatpush.bf16.msra.mxu0 %v1353
    %1527 = vmatpush.bf16.msra.mxu0 %v1351
    %1528 = vmatpush.bf16.msra.mxu0 %v1349
    %1529 = vmatpush.bf16.msra.mxu0 %v1347
    %1530 = vmatpush.bf16.msra.mxu0 %v1345
    %1531 = vmatpush.bf16.msra.mxu0 %v1343
    %1532 = vmatpush.bf16.msra.mxu0 %v1341
    %1533 = vmatmul.bf16.gmra.mxu0 %v1079
    %v1534 = vpop.f32.mrf.mxu0
    %v1535 = vadd.f32 %v1470, %v1534
    %v1536 = vpop.f32.mrf.mxu0
    %1537 = vdwg.mxu0
    %1538 = vmatpush.bf16.msra.mxu0 %v1371
    %1539 = vmatpush.bf16.msra.mxu0 %v1369
    %1540 = vmatpush.bf16.msra.mxu0 %v1367
    %1541 = vmatpush.bf16.msra.mxu0 %v1365
    %1542 = vmatpush.bf16.msra.mxu0 %v1363
    %1543 = vmatpush.bf16.msra.mxu0 %v1361
    %1544 = vmatpush.bf16.msra.mxu0 %v1359
    %1545 = vmatpush.bf16.msra.mxu0 %v1357
    %1546 = vmatmul.bf16.gmra.mxu0 %v1080
    %v1547 = vpop.f32.mrf.mxu0
    %v1548 = vadd.f32 %v1535, %v1547
    %v1549 = vpop.f32.mrf.mxu0
    %1550 = vdwg.mxu0
    %1551 = vmatpush.bf16.msra.mxu0 %v1387
    %1552 = vmatpush.bf16.msra.mxu0 %v1385
    %1553 = vmatpush.bf16.msra.mxu0 %v1383
    %1554 = vmatpush.bf16.msra.mxu0 %v1381
    %1555 = vmatpush.bf16.msra.mxu0 %v1379
    %1556 = vmatpush.bf16.msra.mxu0 %v1377
    %1557 = vmatpush.bf16.msra.mxu0 %v1375
    %1558 = vmatpush.bf16.msra.mxu0 %v1373
    %1559 = vmatmul.bf16.gmra.mxu0 %v1081
    %v1560 = vpop.f32.mrf.mxu0
    %v1561 = vadd.f32 %v1548, %v1560
    %v1562 = vpop.f32.mrf.mxu0
    %1563 = vdwg.mxu0
    %1564 = vmatpush.bf16.msra.mxu0 %v1403
    %1565 = vmatpush.bf16.msra.mxu0 %v1401
    %1566 = vmatpush.bf16.msra.mxu0 %v1399
    %1567 = vmatpush.bf16.msra.mxu0 %v1397
    %1568 = vmatpush.bf16.msra.mxu0 %v1395
    %1569 = vmatpush.bf16.msra.mxu0 %v1393
    %1570 = vmatpush.bf16.msra.mxu0 %v1391
    %1571 = vmatpush.bf16.msra.mxu0 %v1389
    %1572 = vmatmul.bf16.gmra.mxu0 %v1082
    %v1573 = vpop.f32.mrf.mxu0
    %v1574 = vadd.f32 %v1561, %v1573
    %v1575 = vpop.f32.mrf.mxu0
    %1576 = vdwg.mxu0
    %v1577 = vmax.f32 %v1522, 0.0
    %v1578 = vmax.f32 %v1574, 0.0
    %v1579 = vpack.c.bf16 %v1577, %v1577
    %v1580 = vpack.c.bf16 %v1578, %v1578
    %v1581 = vld [vmem:[#allocation7] sm:$0xf]
    %v1582 = vld [vmem:[#allocation7 + $0x4] sm:$0xf]
    %v1583 = vld [vmem:[#allocation7 + $0x8] sm:$0xf]
    %v1584 = vld [vmem:[#allocation7 + $0xc] sm:$0xf]
    %v1585 = vld [vmem:[#allocation7 + $0x10] sm:$0xf]
    %v1586 = vld [vmem:[#allocation7 + $0x14] sm:$0xf]
    %v1587 = vld [vmem:[#allocation7 + $0x18] sm:$0xf]
    %v1588 = vld [vmem:[#allocation7 + $0x1c] sm:$0xf]
    %v1589 = vld [vmem:[#allocation7 + $0x20] sm:$0xf]
    %v1590 = vld [vmem:[#allocation7 + $0x24] sm:$0xf]
    %v1591 = vld [vmem:[#allocation7 + $0x28] sm:$0xf]
    %v1592 = vld [vmem:[#allocation7 + $0x2c] sm:$0xf]
    %v1593 = vld [vmem:[#allocation7 + $0x30] sm:$0xf]
    %v1594 = vld [vmem:[#allocation7 + $0x34] sm:$0xf]
    %v1595 = vld [vmem:[#allocation7 + $0x38] sm:$0xf]
    %v1596 = vld [vmem:[#allocation7 + $0x3c] sm:$0xf]
    %v1597 = vld [vmem:[#allocation7 + $0x40] sm:$0xf]
    %v1598 = vld [vmem:[#allocation7 + $0x44] sm:$0xf]
    %v1599 = vld [vmem:[#allocation7 + $0x48] sm:$0xf]
    %v1600 = vld [vmem:[#allocation7 + $0x4c] sm:$0xf]
    %v1601 = vld [vmem:[#allocation7 + $0x50] sm:$0xf]
    %v1602 = vld [vmem:[#allocation7 + $0x54] sm:$0xf]
    %v1603 = vld [vmem:[#allocation7 + $0x58] sm:$0xf]
    %v1604 = vld [vmem:[#allocation7 + $0x5c] sm:$0xf]
    %v1605 = vld [vmem:[#allocation7 + $0x60] sm:$0xf]
    %v1606 = vld [vmem:[#allocation7 + $0x64] sm:$0xf]
    %v1607 = vld [vmem:[#allocation7 + $0x68] sm:$0xf]
    %v1608 = vld [vmem:[#allocation7 + $0x6c] sm:$0xf]
    %v1609 = vld [vmem:[#allocation7 + $0x70] sm:$0xf]
    %v1610 = vld [vmem:[#allocation7 + $0x74] sm:$0xf]
    %v1611 = vld [vmem:[#allocation7 + $0x78] sm:$0xf]
    %v1612 = vld [vmem:[#allocation7 + $0x7c] sm:$0xf]
    %v1613 = vld [vmem:[%s6] sm:$0x1]
    %v1646 = vunpack.c.l.b16 %v1581
    %v1647 = vunpack.c.l.b16 %v1582
    %v1648 = vunpack.c.l.b16 %v1583
    %v1649 = vunpack.c.l.b16 %v1584
    %v1650 = vunpack.c.l.b16 %v1585
    %v1651 = vunpack.c.l.b16 %v1586
    %v1652 = vunpack.c.l.b16 %v1587
    %v1653 = vunpack.c.l.b16 %v1588
    %v1654 = vunpack.c.l.b16 %v1589
    %v1655 = vunpack.c.l.b16 %v1590
    %v1656 = vunpack.c.l.b16 %v1591
    %v1657 = vunpack.c.l.b16 %v1592
    %v1658 = vunpack.c.l.b16 %v1593
    %v1659 = vunpack.c.l.b16 %v1594
    %v1660 = vunpack.c.l.b16 %v1595
    %v1661 = vunpack.c.l.b16 %v1596
    %v1662 = vunpack.c.l.b16 %v1597
    %v1663 = vunpack.c.l.b16 %v1598
    %v1664 = vunpack.c.l.b16 %v1599
    %v1665 = vunpack.c.l.b16 %v1600
    %v1666 = vunpack.c.l.b16 %v1601
    %v1667 = vunpack.c.l.b16 %v1602
    %v1668 = vunpack.c.l.b16 %v1603
    %v1669 = vunpack.c.l.b16 %v1604
    %v1670 = vunpack.c.l.b16 %v1605
    %v1671 = vunpack.c.l.b16 %v1606
    %v1672 = vunpack.c.l.b16 %v1607
    %v1673 = vunpack.c.l.b16 %v1608
    %v1674 = vunpack.c.l.b16 %v1609
    %v1675 = vunpack.c.l.b16 %v1610
    %v1676 = vunpack.c.l.b16 %v1611
    %v1677 = vunpack.c.l.b16 %v1612
    %v1678 = vpack.c.b16 %v1647, %v1646
    %v1679 = vpack.c.b16 %v1649, %v1648
    %v1680 = vpack.c.b16 %v1651, %v1650
    %v1681 = vpack.c.b16 %v1653, %v1652
    %v1682 = vpack.c.b16 %v1655, %v1654
    %v1683 = vpack.c.b16 %v1657, %v1656
    %v1684 = vpack.c.b16 %v1659, %v1658
    %v1685 = vpack.c.b16 %v1661, %v1660
    %v1686 = vpack.c.b16 %v1663, %v1662
    %v1687 = vpack.c.b16 %v1665, %v1664
    %v1688 = vpack.c.b16 %v1667, %v1666
    %v1689 = vpack.c.b16 %v1669, %v1668
    %v1690 = vpack.c.b16 %v1671, %v1670
    %v1691 = vpack.c.b16 %v1673, %v1672
    %v1692 = vpack.c.b16 %v1675, %v1674
    %v1693 = vpack.c.b16 %v1677, %v1676
    %1710 = vmatpush.bf16.msra.mxu0 %v1685
    %1711 = vmatpush.bf16.msra.mxu0 %v1684
    %1712 = vmatpush.bf16.msra.mxu0 %v1683
    %1713 = vmatpush.bf16.msra.mxu0 %v1682
    %1714 = vmatpush.bf16.msra.mxu0 %v1681
    %1715 = vmatpush.bf16.msra.mxu0 %v1680
    %1716 = vmatpush.bf16.msra.mxu0 %v1679
    %1717 = vmatpush.bf16.msra.mxu0 %v1678
    %1718 = vmatmul.bf16.gmra.mxu0 %v1579
    %v1719 = vpop.f32.mrf.mxu0
    %v1720 = vadd.f32 %v1613, %v1719
    %v1721 = vpop.f32.mrf.mxu0
    %1722 = vdwg.mxu0
    %1723 = vmatpush.bf16.msra.mxu0 %v1693
    %1724 = vmatpush.bf16.msra.mxu0 %v1692
    %1725 = vmatpush.bf16.msra.mxu0 %v1691
    %1726 = vmatpush.bf16.msra.mxu0 %v1690
    %1727 = vmatpush.bf16.msra.mxu0 %v1689
    %1728 = vmatpush.bf16.msra.mxu0 %v1688
    %1729 = vmatpush.bf16.msra.mxu0 %v1687
    %1730 = vmatpush.bf16.msra.mxu0 %v1686
    %1731 = vmatmul.bf16.gmra.mxu0 %v1580
    %v1732 = vpop.f32.mrf.mxu0
    %v1733 = vadd.f32 %v1720, %v1732
    %v1734 = vpop.f32.mrf.mxu0
    %1735 = vdwg.mxu0
    %1736 = vst [vmem:[#allocation8] sm:$0x1] %v1733
    // Predicated region
    $region42: #{sensor_forward.1} parent=1 // pred_check
      _
    $region43: #{sensor_forward.1} parent=1 // pred_check_branch
      %1738 = sbr.rel (0) target = $region45
    $region44: #{sensor_forward.1} parent=1 // pred_region
      %1740 = vsyncadd [#allocation4], 0
      %s1742 = sshll.u32 [#allocation8], 4
      %s1743 = int_to_ptr.vmem [resolvable:$true] %s1742
      %s1744 = sshll.u32 %s7, 4
      %s1745 = int_to_ptr.hbm [resolvable:$true] %s1744
      %1747 = dma.vmem_to_hbm [thread:$0]  %s1743, 16, %s1745, [#allocation4]
    $region45: #{sensor_forward.1} parent=1 // pred_fallthru
      _
    // Predicated region
    $region46: #{sensor_forward.1} parent=1 // pred_check
      _
    $region47: #{sensor_forward.1} parent=1 // pred_check_branch
      %1749 = sbr.rel (0) target = $region49
    $region48: #{sensor_forward.1} parent=1 // pred_region
      %1751 = dma.done [#allocation4], 16
    $region49: #{sensor_forward.1} parent=1 // pred_fallthru
      _
    %1752 = vsyncpa [#allocation3], 1
    %1753 = vsyncpa [#allocation6], 1
    %1754 = vsyncpa [#allocation4], 1

</llo_original>
